<compile_context>
chip_gen: v5e
topology: v5e:2x2
jax: 0.10.0
libtpu: 0.0.40
codegen_flags: <defaults>
</compile_context>

<pallas_src>
import functools
import math

import numpy as np
import jax
import jax.numpy as jnp
from jax.experimental import pallas as pl
from jax.experimental.pallas import tpu as pltpu

_LANE = 128
_SUBLANE = 16            # bf16 packs 2 rows / sublane -> minimum (16, 128) tile
_TN_TARGET = 1024        # output-sample tile target (VMEM-safe on v5e/v6e/v7x)
_TK_TARGET = 1024        # contraction tile target (dense fallback)
_MAX_BAND_TILE = 4096    # largest acceptable lcm(hop, 128) tile for the banded path
_MAX_BAND_FRAMES = 512   # largest per-tile frame unroll for the banded path
_NOLA_EPS = 1e-11        # torch.istft window-envelope threshold
_DX_RESIDENT_BYTES = 4 << 20   # dense path: keep dX fully VMEM resident below this


def _round_up(x, m):
    return ((x + m - 1) // m) * m


def _cdiv(a, b):
    return (a + b - 1) // b


# ----------------------------------------------------------------------------
# Host-side linear-algebra view of torch.istft (onesided, real output).
# ----------------------------------------------------------------------------
def _frame_basis(n_fft, win_length, window, normalized):
    """Per-frame windowed irfft as a real linear map, rows = [real-part; imag-part].

    Returns B0 of shape (2*n_bins, n_fft) float64 and the n_fft padded window."""
    n_bins = n_fft // 2 + 1
    if window is None:
        window = np.ones(win_length, dtype=np.float64)
    window = np.asarray(window, dtype=np.float64).reshape(win_length)
    pad_l = (n_fft - win_length) // 2          # torch pads the window centered
    w = np.zeros(n_fft, dtype=np.float64)
    w[pad_l:pad_l + win_length] = window

    k = np.arange(n_bins, dtype=np.float64)[:, None]
    n = np.arange(n_fft, dtype=np.float64)[None, :]
    ang = 2.0 * np.pi * k * n / n_fft
    scale = np.full((n_bins, 1), 2.0)
    scale[0, 0] = 1.0
    if n_fft % 2 == 0:
        scale[-1, 0] = 1.0
    C = np.cos(ang) * scale / n_fft            # applied to Re(X)
    S = -np.sin(ang) * scale / n_fft           # applied to Im(X)
    S[0, :] = 0.0                              # irfft ignores imag of DC / Nyquist
    if n_fft % 2 == 0:
        S[-1, :] = 0.0
    if normalized:
        C *= math.sqrt(n_fft)
        S *= math.sqrt(n_fft)
    B0 = np.concatenate([C, S], axis=0) * w[None, :]
    return B0, w


def _envelope(w, n_fft, hop, n_frames, center, length):
    full_len = n_fft + hop * (n_frames - 1)
    env = np.zeros(full_len, dtype=np.float64)
    w2 = w * w
    for f in range(n_frames):
        env[f * hop:f * hop + n_fft] += w2
    start = n_fft // 2 if center else 0
    out_len = full_len - 2 * start
    L = out_len if length is None else length
    Lv = min(L, out_len)
    if Lv > 0 and np.min(np.abs(env[start:start + Lv])) <= _NOLA_EPS:
        raise ValueError(
            "window overlap-add (NOLA) condition violated; torch.istft would fail")
    return env, start, out_len, L


# ----------------------------------------------------------------------------
# Banded (primary) path: VMEM-resident per-frame basis + static overlap-add.
# ----------------------------------------------------------------------------
def _plan_banded(B0, env, start, out_len, L, n_fft, hop, n_frames, compute_dtype):
    unit = hop * _LANE // math.gcd(hop, _LANE)     # lcm(hop, 128)
    if unit > _MAX_BAND_TILE:
        return None                                # fall back to the dense kernel

    # Output tile width: as large as the target allows, but try to give the
    # 'parallel' grid axis at least two steps (megacore / v7x dual TensorCore).
    max_units = max(1, _TN_TARGET // unit)
    units_needed = max(1, _cdiv(max(L, 1), unit))
    tn_units = 1 if units_needed == 1 else min(max_units, max(1, _cdiv(units_needed, 2)))
    tn = tn_units * unit
    L_pad = _round_up(max(L, 1), tn)
    nL = L_pad // tn
    S = tn // hop                                  # frame stride per tile

    f_lo0 = (start - n_fft) // hop + 1             # first frame touching tile 0
    f_hi0 = -((-(start + tn)) // hop) - 1          # last frame touching tile 0
    F = f_hi0 - f_lo0 + 1
    if F > _MAX_BAND_FRAMES or f_lo0 > 0:
        return None
    pad_front = -f_lo0                             # virtual zero frames in front

    # Static overlap-add spans: tile-invariant because hop | tn.
    spans = []
    for j in range(F):
        off = (j - pad_front) * hop - start
        dlo, dhi = max(0, off), min(tn, off + n_fft)
        if dhi <= dlo:
            continue
        spans.append((j, dlo, dhi, dlo - off, dhi - off))

    K0 = B0.shape[0]
    K0_pad = _round_up(K0, _LANE)
    NF_pad = _round_up(n_fft, _LANE)
    basis = np.zeros((K0_pad, NF_pad), dtype=np.float64)
    basis[:K0, :n_fft] = B0

    env_inv = np.zeros((1, L_pad), dtype=np.float32)
    Lv = min(L, out_len)
    if Lv > 0:
        env_inv[0, :Lv] = (1.0 / env[start:start + Lv]).astype(np.float32)

    return dict(kind="banded",
                basis=jnp.asarray(basis, dtype=compute_dtype),
                env_inv=jnp.asarray(env_inv),
                spans=tuple(spans), tn=tn, nL=nL, L_pad=L_pad, S=S, F=F,
                pad_front=pad_front, K0=K0, K0_pad=K0_pad, NF_pad=NF_pad,
                L=L, n_frames=n_frames)


def _banded_kernel(dx_ref, basis_ref, envinv_ref, out_ref, *scratch,
                   reduction, spans):
    # dx_ref:     (F, B_pad, K0_pad)  per-tile frame slab (double-buffered stream)
    # basis_ref:  (K0_pad, NF_pad)    VMEM-resident per-frame windowed-irfft basis
    # envinv_ref: (1, tn)             1/window-envelope (zero on padded columns)
    acc = out_ref if reduction == "none" else scratch[0]
    acc[...] = jnp.zeros_like(acc)
    basis = basis_ref[...]
    for (j, dlo, dhi, slo, shi) in spans:
        contrib = jnp.dot(dx_ref[j], basis, preferred_element_type=jnp.float32)
        acc[:, dlo:dhi] += contrib[:, slo:shi]     # static-offset overlap-add
    wav = jnp.abs(acc[...] * envinv_ref[...])
    if reduction == "none":
        out_ref[...] = wav
    else:
        out_ref[...] = jnp.broadcast_to(jnp.sum(wav), out_ref.shape)


def _run_banded(plan, dxr, dxi, B, reduction):
    tn, nL, L_pad = plan["tn"], plan["nL"], plan["L_pad"]
    S, F, pad_front = plan["S"], plan["F"], plan["pad_front"]
    K0, K0_pad, NF_pad = plan["K0"], plan["K0_pad"], plan["NF_pad"]
    L, n_frames, spans = plan["L"], plan["n_frames"], plan["spans"]
    basis, env_inv = plan["basis"], plan["env_inv"]
    B_pad = _round_up(max(B, 1), _SUBLANE)

    # (B, n_bins, n_frames) re/im -> frame-major stacked (frames, B, 2*n_bins),
    # padded with virtual zero frames so every tile sees exactly F frames.
    dx = jnp.concatenate([dxr, dxi], axis=1)                  # (B, 2*n_bins, frames)
    dx = jnp.transpose(dx, (2, 0, 1)).astype(basis.dtype)     # (frames, B, 2*n_bins)
    need = (nL - 1) * S + F
    pad_back = max(0, need - (pad_front + n_frames))
    dx = jnp.pad(dx, ((pad_front, pad_back), (0, B_pad - B), (0, K0_pad - K0)))
    idx = (np.arange(nL) * S)[:, None] + np.arange(F)[None, :]
    dx_tiles = jnp.take(dx, jnp.asarray(idx.reshape(-1)), axis=0)  # (nL*F, B_pad, K0_pad)

    dx_spec = pl.BlockSpec((F, B_pad, K0_pad), lambda l: (l, 0, 0))
    basis_spec = pl.BlockSpec((K0_pad, NF_pad), lambda l: (0, 0))   # resident
    env_spec = pl.BlockSpec((1, tn), lambda l: (0, l))

    if reduction == "none":
        out_shape = jax.ShapeDtypeStruct((B_pad, L_pad), jnp.float32)
        out_spec = pl.BlockSpec((B_pad, tn), lambda l: (0, l))
        scratch = []
    else:
        out_shape = jax.ShapeDtypeStruct((nL, 8, _LANE), jnp.float32)
        out_spec = pl.BlockSpec((1, 8, _LANE), lambda l: (l, 0, 0))
        scratch = [pltpu.VMEM((B_pad, tn), jnp.float32)]

    item = np.dtype(basis.dtype).itemsize
    cost = pl.CostEstimate(
        flops=int(2 * nL * len(spans) * B_pad * K0_pad * NF_pad),
        transcendentals=0,
        bytes_accessed=int(dx_tiles.size * item + basis.size * item
                           + env_inv.size * 4 + int(np.prod(out_shape.shape)) * 4))

    vmem_est = int(basis.size * item + 3 * F * B_pad * K0_pad * item
                   + 4 * B_pad * tn * 4)
    if vmem_est > (24 << 20):
        cp = pltpu.CompilerParams(
            dimension_semantics=("parallel",),
            vmem_limit_bytes=int(min(vmem_est * 5 // 4, 96 << 20)))
    else:
        cp = pltpu.CompilerParams(dimension_semantics=("parallel",))

    kernel = functools.partial(_banded_kernel, reduction=reduction, spans=spans)
    out = pl.pallas_call(
        kernel,
        out_shape=out_shape,
        grid_spec=pltpu.PrefetchScalarGridSpec(
            num_scalar_prefetch=0,
            grid=(nL,),
            in_specs=[dx_spec, basis_spec, env_spec],
            out_specs=out_spec,
            scratch_shapes=scratch),
        compiler_params=cp,
        cost_estimate=cost,
    )(dx_tiles, basis, env_inv)

    if reduction == "none":
        return out[:B, :L]
    total = jnp.sum(out[:, 0, 0])
    if reduction == "mean":
        total = total / jnp.float32(B * L)
    return total


# ----------------------------------------------------------------------------
# Dense fallback path: streamed (B, 2J) @ (2J, L) matmul with K-last grid.
# ----------------------------------------------------------------------------
def _plan_dense(B0, env, start, out_len, L, n_fft, hop, n_frames, compute_dtype):
    n_bins = n_fft // 2 + 1
    J = n_bins * n_frames
    K0 = 2 * J
    Lv = min(L, out_len)

    A = np.zeros((2 * n_bins, n_frames, max(L, 1)), dtype=np.float64)
    for f in range(n_frames):
        t0 = f * hop - start
        lo, hi = max(t0, 0), min(t0 + n_fft, Lv)
        if lo >= hi:
            continue
        nn = np.arange(lo, hi) - t0
        gain = 1.0 / env[lo + start:hi + start]
        A[:, f, lo:hi] = B0[:, nn] * gain[None, :]
    A = np.concatenate([A[:n_bins].reshape(J, -1), A[n_bins:].reshape(J, -1)], axis=0)

    # Pad K and L up to multiples of the tile (never degenerate 128-wide tiles).
    tk = min(_TK_TARGET, _round_up(K0, _LANE))
    tn = min(_TN_TARGET, _round_up(max(L, 1), _LANE))
    K_pad = _round_up(K0, tk)
    L_pad = _round_up(max(L, 1), tn)
    Ap = np.zeros((K_pad, L_pad), dtype=np.float64)
    Ap[:K0, :A.shape[1]] = A

    return dict(kind="dense", basis=jnp.asarray(Ap, dtype=compute_dtype),
                tk=tk, tn=tn, K0=K0, K_pad=K_pad, L_pad=L_pad, L=L, J=J)


def _dense_kernel(dx_ref, a_ref, out_ref, *scratch, reduction, tk, dx_resident):
    k = pl.program_id(1)
    nk = pl.num_programs(1)
    acc = out_ref if reduction == "none" else scratch[0]

    @pl.when(k == 0)
    def _():
        acc[...] = jnp.zeros_like(acc)

    if dx_resident:
        lhs = dx_ref[:, pl.ds(pl.multiple_of(k * tk, 128), tk)]
    else:
        lhs = dx_ref[...]
    acc[...] += jnp.dot(lhs, a_ref[...], preferred_element_type=jnp.float32)

    @pl.when(k == nk - 1)
    def _():
        if reduction == "none":
            out_ref[...] = jnp.abs(out_ref[...])
        else:
            out_ref[...] = jnp.broadcast_to(jnp.sum(jnp.abs(acc[...])), out_ref.shape)


def _run_dense(plan, dxr, dxi, B, reduction):
    basis = plan["basis"]
    tk, tn = plan["tk"], plan["tn"]
    K0, K_pad, L_pad, L, J = plan["K0"], plan["K_pad"], plan["L_pad"], plan["L"], plan["J"]
    B_pad = _round_up(max(B, 1), _SUBLANE)
    nL, nK = L_pad // tn, K_pad // tk
    item = np.dtype(basis.dtype).itemsize

    dx = jnp.concatenate([dxr.reshape(B, J), dxi.reshape(B, J)], axis=1)
    dx = jnp.pad(dx, ((0, B_pad - B), (0, K_pad - K0))).astype(basis.dtype)

    dx_resident = (B_pad * K_pad * item) <= _DX_RESIDENT_BYTES
    if dx_resident:
        dx_spec = pl.BlockSpec((B_pad, K_pad), lambda l, k: (0, 0))   # resident
    else:
        dx_spec = pl.BlockSpec((B_pad, tk), lambda l, k: (0, k))
    a_spec = pl.BlockSpec((tk, tn), lambda l, k: (k, l))

    if reduction == "none":
        out_shape = jax.ShapeDtypeStruct((B_pad, L_pad), jnp.float32)
        out_spec = pl.BlockSpec((B_pad, tn), lambda l, k: (0, l))
        scratch = []
    else:
        out_shape = jax.ShapeDtypeStruct((nL, 8, _LANE), jnp.float32)
        out_spec = pl.BlockSpec((1, 8, _LANE), lambda l, k: (l, 0, 0))
        scratch = [pltpu.VMEM((B_pad, tn), jnp.float32)]

    cost = pl.CostEstimate(
        flops=int(2 * B_pad * K_pad * L_pad),
        transcendentals=0,
        bytes_accessed=int(basis.size * item + dx.size * item
                           + int(np.prod(out_shape.shape)) * 4))

    kernel = functools.partial(_dense_kernel, reduction=reduction, tk=tk,
                               dx_resident=dx_resident)
    out = pl.pallas_call(
        kernel,
        out_shape=out_shape,
        grid_spec=pltpu.PrefetchScalarGridSpec(
            num_scalar_prefetch=0,
            grid=(nL, nK),                       # K (reduction) axis last
            in_specs=[dx_spec, a_spec],
            out_specs=out_spec,
            scratch_shapes=scratch),
        compiler_params=pltpu.CompilerParams(
            dimension_semantics=("parallel", "arbitrary")),
        cost_estimate=cost,
    )(dx, basis)

    if reduction == "none":
        return out[:B, :L]
    total = jnp.sum(out[:, 0, 0])
    if reduction == "mean":
        total = total / jnp.float32(B * L)
    return total


# ----------------------------------------------------------------------------
# Module wrapper.
# ----------------------------------------------------------------------------
class WaveformL1Loss:
    """Pallas-backed equivalent of audyn.criterion.bsrnn.WaveformL1Loss."""

    def __init__(self, n_fft, hop_length=None, win_length=None, window=None,
                 center=True, normalized=False, onesided=None, length=None,
                 return_complex=False, reduction="mean",
                 compute_dtype=jnp.bfloat16, force_dense=False):
        if onesided is not None and not onesided:
            # TODO(synk): two-sided istft (complex input covering all n_fft bins)
            raise NotImplementedError("only onesided istft is supported")
        if return_complex:
            # TODO(synk): return_complex=True (complex waveform output)
            raise NotImplementedError("only real waveform output is supported")
        if reduction not in ("mean", "sum", "none"):
            raise ValueError(f"Invalid reduction {reduction} is found.")
        self.n_fft = n_fft
        self.hop_length = hop_length if hop_length is not None else n_fft // 4
        self.win_length = win_length if win_length is not None else n_fft
        self.window = None if window is None else np.asarray(window)
        self.center = center
        self.normalized = normalized
        self.length = length
        self.reduction = reduction
        self.compute_dtype = compute_dtype
        self.force_dense = force_dense
        self._plan_cache = {}

    def _plan(self, n_frames):
        if n_frames not in self._plan_cache:
            B0, w = _frame_basis(self.n_fft, self.win_length, self.window,
                                 self.normalized)
            env, start, out_len, L = _envelope(w, self.n_fft, self.hop_length,
                                               n_frames, self.center, self.length)
            plan = None
            if not self.force_dense:
                plan = _plan_banded(B0, env, start, out_len, L, self.n_fft,
                                    self.hop_length, n_frames, self.compute_dtype)
            if plan is None:
                plan = _plan_dense(B0, env, start, out_len, L, self.n_fft,
                                   self.hop_length, n_frames, self.compute_dtype)
            self._plan_cache[n_frames] = plan
        return self._plan_cache[n_frames]

    def __call__(self, input, target):
        assert input.shape == target.shape
        *batch_shape, n_bins, n_frames = input.shape
        assert n_bins == self.n_fft // 2 + 1
        plan = self._plan(n_frames)
        B = int(np.prod(batch_shape)) if batch_shape else 1

        # Linearity of ISTFT: take the spectrogram difference once, up front.
        diff = (input - target).reshape(B, n_bins, n_frames)
        dxr = jnp.real(diff).astype(jnp.float32)
        dxi = jnp.imag(diff).astype(jnp.float32)

        if plan["kind"] == "banded":
            out = _run_banded(plan, dxr, dxi, B, self.reduction)
        else:
            out = _run_dense(plan, dxr, dxi, B, self.reduction)
        if self.reduction == "none":
            out = out.reshape(tuple(batch_shape) + (-1,))
        return out


# ----------------------------------------------------------------------------
# Pure-JAX reference (jnp.fft based) for a sanity check.
# ----------------------------------------------------------------------------
def _reference_loss(spec_in, spec_tg, n_fft, hop, window_full, center):
    def istft(spec):
        bshape = spec.shape[:-2]
        n_bins, n_frames = spec.shape[-2:]
        x = spec.reshape((-1, n_bins, n_frames))
        frames = jnp.fft.irfft(x, n=n_fft, axis=-2)          # (B, n_fft, F)
        frames = frames * window_full[None, :, None]
        full_len = n_fft + hop * (n_frames - 1)
        Bn = x.shape[0]
        ola = jnp.zeros((Bn, full_len), jnp.float32)
        env = jnp.zeros((full_len,), jnp.float32)
        for f in range(n_frames):
            ola = ola.at[:, f * hop:f * hop + n_fft].add(frames[:, :, f])
            env = env.at[f * hop:f * hop + n_fft].add(window_full ** 2)
        wav = ola / env[None, :]
        if center:
            wav = wav[:, n_fft // 2: full_len - n_fft // 2]
        return wav.reshape(tuple(bshape) + (-1,))

    return jnp.mean(jnp.abs(istft(spec_in) - istft(spec_tg)))


if __name__ == "__main__":
    # small, module-consistent configuration
    n_fft = 16
    hop_length = 4
    win_length = 16
    nw = np.arange(win_length)
    hann = (0.5 - 0.5 * np.cos(2.0 * np.pi * nw / win_length)).astype(np.float32)

    batch_shape = (2, 3)                 # e.g. (batch, sources)
    n_bins = n_fft // 2 + 1              # 9
    n_frames = 8
    shape = batch_shape + (n_bins, n_frames)
    expected_len = n_fft + hop_length * (n_frames - 1) - 2 * (n_fft // 2)   # 28

    key = jax.random.PRNGKey(0)
    k1, k2, k3, k4 = jax.random.split(key, 4)
    spec_in = (jax.random.normal(k1, shape, jnp.float32)
               + 1j * jax.random.normal(k2, shape, jnp.float32)).astype(jnp.complex64)
    spec_tg = (jax.random.normal(k3, shape, jnp.float32)
               + 1j * jax.random.normal(k4, shape, jnp.float32)).astype(jnp.complex64)

    common = dict(hop_length=hop_length, win_length=win_length, window=hann,
                  center=True, normalized=False)

    # Primary (banded, bf16) path.
    criterion = WaveformL1Loss(n_fft, reduction="mean", **common)
    loss = jax.block_until_ready(criterion(spec_in, spec_tg))

    ref = jax.block_until_ready(
        _reference_loss(spec_in, spec_tg, n_fft, hop_length,
                        jnp.asarray(hann, jnp.float32), center=True))
    # bf16 dx/basis with f32 accumulation -> slightly looser tolerance.
    np.testing.assert_allclose(np.asarray(loss), np.asarray(ref),
                               rtol=3e-2, atol=2e-3)

    # float32 compute-dtype fallback (accuracy path) against the FFT reference.
    crit_f32 = WaveformL1Loss(n_fft, reduction="mean",
                              compute_dtype=jnp.float32, **common)
    loss_f32 = jax.block_until_ready(crit_f32(spec_in, spec_tg))
    np.testing.assert_allclose(np.asarray(loss_f32), np.asarray(ref),
                               rtol=1e-2, atol=1e-4)

    # Dense fallback kernel agrees with the banded kernel.
    crit_dense = WaveformL1Loss(n_fft, reduction="mean", force_dense=True, **common)
    loss_dense = jax.block_until_ready(crit_dense(spec_in, spec_tg))
    np.testing.assert_allclose(np.asarray(loss_dense), np.asarray(loss),
                               rtol=2e-2, atol=2e-3)

    # 'sum' and 'none' reduction paths are consistent with 'mean'.
    crit_sum = WaveformL1Loss(n_fft, reduction="sum", **common)
    crit_none = WaveformL1Loss(n_fft, reduction="none", **common)
    loss_sum = jax.block_until_ready(crit_sum(spec_in, spec_tg))
    loss_none = jax.block_until_ready(crit_none(spec_in, spec_tg))
    assert loss_none.shape == batch_shape + (expected_len,), loss_none.shape
    n_elems = float(np.prod(loss_none.shape))
    np.testing.assert_allclose(np.asarray(loss_sum) / n_elems, np.asarray(loss),
                               rtol=1e-5, atol=1e-6)
    np.testing.assert_allclose(np.asarray(jnp.mean(loss_none)), np.asarray(loss),
                               rtol=1e-5, atol=1e-6)

    print("KERNEL_OK")
</pallas_src>

<mosaic_0001>
module attributes {stable_mosaic.version = 11 : i64} {
  func.func @_banded_kernel(%arg0: i32, %arg1: memref<35x16x128xbf16, #tpu.memory_space<vmem>>, %arg2: memref<128x128xbf16, #tpu.memory_space<vmem>>, %arg3: memref<1x128xf32, #tpu.memory_space<vmem>>, %arg4: memref<1x8x128xf32, #tpu.memory_space<vmem>>, %arg5: memref<16x128xf32, #tpu.memory_space<vmem>>) attributes {dimension_semantics = [#tpu.dimension_semantics<parallel>], iteration_bounds = array<i64: 1>, scalar_prefetch = 0 : i64, scratch_operands = 1 : i64, tpu.core_type = #tpu.core_type<tc>, window_params = [{transform_indices = @transform_0, window_bounds = array<i64: 35, 16, 128>}, {pipeline_mode = #tpu.pipeline_mode<synchronous>, transform_indices = @transform_1, window_bounds = array<i64: 128, 128>}, {transform_indices = @transform_2, window_bounds = array<i64: 1, 128>}, {transform_indices = @transform_3, window_bounds = array<i64: 1, 8, 128>}]} {
    %cst = arith.constant 0.000000e+00 : f32
    %0 = vector.broadcast %cst : f32 to vector<16x128xf32>
    %c0 = arith.constant 0 : index
    %c0_0 = arith.constant 0 : index
    %1 = vector.load %arg5[%c0, %c0_0] : memref<16x128xf32, #tpu.memory_space<vmem>>, vector<16x128xf32>
    tpu.vector_store %arg5[%c0, %c0_0], %0 {strides = array<i32>} : memref<16x128xf32, #tpu.memory_space<vmem>>, vector<16x128xf32>,
    %c0_1 = arith.constant 0 : index
    %c0_2 = arith.constant 0 : index
    %2 = vector.load %arg2[%c0_1, %c0_2] : memref<128x128xbf16, #tpu.memory_space<vmem>>, vector<128x128xbf16>
    %c0_3 = arith.constant 0 : index
    %c0_4 = arith.constant 0 : index
    %c0_5 = arith.constant 0 : index
    %3 = vector.load %arg1[%c0_3, %c0_4, %c0_5] : memref<35x16x128xbf16, #tpu.memory_space<vmem>>, vector<1x16x128xbf16>
    %4 = vector.shape_cast %3 : vector<1x16x128xbf16> to vector<16x128xbf16>
    %cst_6 = arith.constant dense<0.000000e+00> : vector<16x128xf32>
    %5 = tpu.matmul %4, %2, %cst_6 {dimension_numbers = #tpu.dot_dimension_numbers<[1], [0], [0], [1], [0, 0, 1, 1], [], []>} : vector<16x128xbf16>, vector<128x128xbf16>, vector<16x128xf32> -> vector<16x128xf32>
    %c0_7 = arith.constant 0 : index
    %c0_8 = arith.constant 0 : index
    %6 = vector.load %arg5[%c0_7, %c0_8] : memref<16x128xf32, #tpu.memory_space<vmem>>, vector<16x4xf32>
    %7 = vector.extract_strided_slice %5 {offsets = [0, 12], sizes = [16, 4], strides = [1, 1]} : vector<16x128xf32> to vector<16x4xf32>
    %8 = arith.addf %6, %7 : vector<16x4xf32>
    %c0_9 = arith.constant 0 : index
    %c0_10 = arith.constant 0 : index
    %9 = vector.load %arg5[%c0_9, %c0_10] : memref<16x128xf32, #tpu.memory_space<vmem>>, vector<16x4xf32>
    tpu.vector_store %arg5[%c0_9, %c0_10], %8 {strides = array<i32>} : memref<16x128xf32, #tpu.memory_space<vmem>>, vector<16x4xf32>,
    %c1 = arith.constant 1 : index
    %c0_11 = arith.constant 0 : index
    %c0_12 = arith.constant 0 : index
    %10 = vector.load %arg1[%c1, %c0_11, %c0_12] : memref<35x16x128xbf16, #tpu.memory_space<vmem>>, vector<1x16x128xbf16>
    %11 = vector.shape_cast %10 : vector<1x16x128xbf16> to vector<16x128xbf16>
    %cst_13 = arith.constant dense<0.000000e+00> : vector<16x128xf32>
    %12 = tpu.matmul %11, %2, %cst_13 {dimension_numbers = #tpu.dot_dimension_numbers<[1], [0], [0], [1], [0, 0, 1, 1], [], []>} : vector<16x128xbf16>, vector<128x128xbf16>, vector<16x128xf32> -> vector<16x128xf32>
    %c0_14 = arith.constant 0 : index
    %c0_15 = arith.constant 0 : index
    %13 = vector.load %arg5[%c0_14, %c0_15] : memref<16x128xf32, #tpu.memory_space<vmem>>, vector<16x8xf32>
    %14 = vector.extract_strided_slice %12 {offsets = [0, 8], sizes = [16, 8], strides = [1, 1]} : vector<16x128xf32> to vector<16x8xf32>
    %15 = arith.addf %13, %14 : vector<16x8xf32>
    %c0_16 = arith.constant 0 : index
    %c0_17 = arith.constant 0 : index
    %16 = vector.load %arg5[%c0_16, %c0_17] : memref<16x128xf32, #tpu.memory_space<vmem>>, vector<16x8xf32>
    tpu.vector_store %arg5[%c0_16, %c0_17], %15 {strides = array<i32>} : memref<16x128xf32, #tpu.memory_space<vmem>>, vector<16x8xf32>,
    %c2 = arith.constant 2 : index
    %c0_18 = arith.constant 0 : index
    %c0_19 = arith.constant 0 : index
    %17 = vector.load %arg1[%c2, %c0_18, %c0_19] : memref<35x16x128xbf16, #tpu.memory_space<vmem>>, vector<1x16x128xbf16>
    %18 = vector.shape_cast %17 : vector<1x16x128xbf16> to vector<16x128xbf16>
    %cst_20 = arith.constant dense<0.000000e+00> : vector<16x128xf32>
    %19 = tpu.matmul %18, %2, %cst_20 {dimension_numbers = #tpu.dot_dimension_numbers<[1], [0], [0], [1], [0, 0, 1, 1], [], []>} : vector<16x128xbf16>, vector<128x128xbf16>, vector<16x128xf32> -> vector<16x128xf32>
    %c0_21 = arith.constant 0 : index
    %c0_22 = arith.constant 0 : index
    %20 = vector.load %arg5[%c0_21, %c0_22] : memref<16x128xf32, #tpu.memory_space<vmem>>, vector<16x12xf32>
    %21 = vector.extract_strided_slice %19 {offsets = [0, 4], sizes = [16, 12], strides = [1, 1]} : vector<16x128xf32> to vector<16x12xf32>
    %22 = arith.addf %20, %21 : vector<16x12xf32>
    %c0_23 = arith.constant 0 : index
    %c0_24 = arith.constant 0 : index
    %23 = vector.load %arg5[%c0_23, %c0_24] : memref<16x128xf32, #tpu.memory_space<vmem>>, vector<16x12xf32>
    tpu.vector_store %arg5[%c0_23, %c0_24], %22 {strides = array<i32>} : memref<16x128xf32, #tpu.memory_space<vmem>>, vector<16x12xf32>,
    %c3 = arith.constant 3 : index
    %c0_25 = arith.constant 0 : index
    %c0_26 = arith.constant 0 : index
    %24 = vector.load %arg1[%c3, %c0_25, %c0_26] : memref<35x16x128xbf16, #tpu.memory_space<vmem>>, vector<1x16x128xbf16>
    %25 = vector.shape_cast %24 : vector<1x16x128xbf16> to vector<16x128xbf16>
    %cst_27 = arith.constant dense<0.000000e+00> : vector<16x128xf32>
    %26 = tpu.matmul %25, %2, %cst_27 {dimension_numbers = #tpu.dot_dimension_numbers<[1], [0], [0], [1], [0, 0, 1, 1], [], []>} : vector<16x128xbf16>, vector<128x128xbf16>, vector<16x128xf32> -> vector<16x128xf32>
    %c0_28 = arith.constant 0 : index
    %c0_29 = arith.constant 0 : index
    %27 = vector.load %arg5[%c0_28, %c0_29] : memref<16x128xf32, #tpu.memory_space<vmem>>, vector<16x16xf32>
    %28 = vector.extract_strided_slice %26 {offsets = [0, 0], sizes = [16, 16], strides = [1, 1]} : vector<16x128xf32> to vector<16x16xf32>
    %29 = arith.addf %27, %28 : vector<16x16xf32>
    %c0_30 = arith.constant 0 : index
    %c0_31 = arith.constant 0 : index
    %30 = vector.load %arg5[%c0_30, %c0_31] : memref<16x128xf32, #tpu.memory_space<vmem>>, vector<16x16xf32>
    tpu.vector_store %arg5[%c0_30, %c0_31], %29 {strides = array<i32>} : memref<16x128xf32, #tpu.memory_space<vmem>>, vector<16x16xf32>,
    %c4 = arith.constant 4 : index
    %c0_32 = arith.constant 0 : index
    %c0_33 = arith.constant 0 : index
    %31 = vector.load %arg1[%c4, %c0_32, %c0_33] : memref<35x16x128xbf16, #tpu.memory_space<vmem>>, vector<1x16x128xbf16>
    %32 = vector.shape_cast %31 : vector<1x16x128xbf16> to vector<16x128xbf16>
    %cst_34 = arith.constant dense<0.000000e+00> : vector<16x128xf32>
    %33 = tpu.matmul %32, %2, %cst_34 {dimension_numbers = #tpu.dot_dimension_numbers<[1], [0], [0], [1], [0, 0, 1, 1], [], []>} : vector<16x128xbf16>, vector<128x128xbf16>, vector<16x128xf32> -> vector<16x128xf32>
    %c0_35 = arith.constant 0 : index
    %c4_36 = arith.constant 4 : index
    %34 = vector.load %arg5[%c0_35, %c4_36] : memref<16x128xf32, #tpu.memory_space<vmem>>, vector<16x16xf32>
    %35 = vector.extract_strided_slice %33 {offsets = [0, 0], sizes = [16, 16], strides = [1, 1]} : vector<16x128xf32> to vector<16x16xf32>
    %36 = arith.addf %34, %35 : vector<16x16xf32>
    %c0_37 = arith.constant 0 : index
    %c4_38 = arith.constant 4 : index
    %37 = vector.load %arg5[%c0_37, %c4_38] : memref<16x128xf32, #tpu.memory_space<vmem>>, vector<16x16xf32>
    tpu.vector_store %arg5[%c0_37, %c4_38], %36 {strides = array<i32>} : memref<16x128xf32, #tpu.memory_space<vmem>>, vector<16x16xf32>,
    %c5 = arith.constant 5 : index
    %c0_39 = arith.constant 0 : index
    %c0_40 = arith.constant 0 : index
    %38 = vector.load %arg1[%c5, %c0_39, %c0_40] : memref<35x16x128xbf16, #tpu.memory_space<vmem>>, vector<1x16x128xbf16>
    %39 = vector.shape_cast %38 : vector<1x16x128xbf16> to vector<16x128xbf16>
    %cst_41 = arith.constant dense<0.000000e+00> : vector<16x128xf32>
    %40 = tpu.matmul %39, %2, %cst_41 {dimension_numbers = #tpu.dot_dimension_numbers<[1], [0], [0], [1], [0, 0, 1, 1], [], []>} : vector<16x128xbf16>, vector<128x128xbf16>, vector<16x128xf32> -> vector<16x128xf32>
    %c0_42 = arith.constant 0 : index
    %c8 = arith.constant 8 : index
    %41 = vector.load %arg5[%c0_42, %c8] : memref<16x128xf32, #tpu.memory_space<vmem>>, vector<16x16xf32>
    %42 = vector.extract_strided_slice %40 {offsets = [0, 0], sizes = [16, 16], strides = [1, 1]} : vector<16x128xf32> to vector<16x16xf32>
    %43 = arith.addf %41, %42 : vector<16x16xf32>
    %c0_43 = arith.constant 0 : index
    %c8_44 = arith.constant 8 : index
    %44 = vector.load %arg5[%c0_43, %c8_44] : memref<16x128xf32, #tpu.memory_space<vmem>>, vector<16x16xf32>
    tpu.vector_store %arg5[%c0_43, %c8_44], %43 {strides = array<i32>} : memref<16x128xf32, #tpu.memory_space<vmem>>, vector<16x16xf32>,
    %c6 = arith.constant 6 : index
    %c0_45 = arith.constant 0 : index
    %c0_46 = arith.constant 0 : index
    %45 = vector.load %arg1[%c6, %c0_45, %c0_46] : memref<35x16x128xbf16, #tpu.memory_space<vmem>>, vector<1x16x128xbf16>
    %46 = vector.shape_cast %45 : vector<1x16x128xbf16> to vector<16x128xbf16>
    %cst_47 = arith.constant dense<0.000000e+00> : vector<16x128xf32>
    %47 = tpu.matmul %46, %2, %cst_47 {dimension_numbers = #tpu.dot_dimension_numbers<[1], [0], [0], [1], [0, 0, 1, 1], [], []>} : vector<16x128xbf16>, vector<128x128xbf16>, vector<16x128xf32> -> vector<16x128xf32>
    %c0_48 = arith.constant 0 : index
    %c12 = arith.constant 12 : index
    %48 = vector.load %arg5[%c0_48, %c12] : memref<16x128xf32, #tpu.memory_space<vmem>>, vector<16x16xf32>
    %49 = vector.extract_strided_slice %47 {offsets = [0, 0], sizes = [16, 16], strides = [1, 1]} : vector<16x128xf32> to vector<16x16xf32>
    %50 = arith.addf %48, %49 : vector<16x16xf32>
    %c0_49 = arith.constant 0 : index
    %c12_50 = arith.constant 12 : index
    %51 = vector.load %arg5[%c0_49, %c12_50] : memref<16x128xf32, #tpu.memory_space<vmem>>, vector<16x16xf32>
    tpu.vector_store %arg5[%c0_49, %c12_50], %50 {strides = array<i32>} : memref<16x128xf32, #tpu.memory_space<vmem>>, vector<16x16xf32>,
    %c7 = arith.constant 7 : index
    %c0_51 = arith.constant 0 : index
    %c0_52 = arith.constant 0 : index
    %52 = vector.load %arg1[%c7, %c0_51, %c0_52] : memref<35x16x128xbf16, #tpu.memory_space<vmem>>, vector<1x16x128xbf16>
    %53 = vector.shape_cast %52 : vector<1x16x128xbf16> to vector<16x128xbf16>
    %cst_53 = arith.constant dense<0.000000e+00> : vector<16x128xf32>
    %54 = tpu.matmul %53, %2, %cst_53 {dimension_numbers = #tpu.dot_dimension_numbers<[1], [0], [0], [1], [0, 0, 1, 1], [], []>} : vector<16x128xbf16>, vector<128x128xbf16>, vector<16x128xf32> -> vector<16x128xf32>
    %c0_54 = arith.constant 0 : index
    %c16 = arith.constant 16 : index
    %55 = vector.load %arg5[%c0_54, %c16] : memref<16x128xf32, #tpu.memory_space<vmem>>, vector<16x16xf32>
    %56 = vector.extract_strided_slice %54 {offsets = [0, 0], sizes = [16, 16], strides = [1, 1]} : vector<16x128xf32> to vector<16x16xf32>
    %57 = arith.addf %55, %56 : vector<16x16xf32>
    %c0_55 = arith.constant 0 : index
    %c16_56 = arith.constant 16 : index
    %58 = vector.load %arg5[%c0_55, %c16_56] : memref<16x128xf32, #tpu.memory_space<vmem>>, vector<16x16xf32>
    tpu.vector_store %arg5[%c0_55, %c16_56], %57 {strides = array<i32>} : memref<16x128xf32, #tpu.memory_space<vmem>>, vector<16x16xf32>,
    %c8_57 = arith.constant 8 : index
    %c0_58 = arith.constant 0 : index
    %c0_59 = arith.constant 0 : index
    %59 = vector.load %arg1[%c8_57, %c0_58, %c0_59] : memref<35x16x128xbf16, #tpu.memory_space<vmem>>, vector<1x16x128xbf16>
    %60 = vector.shape_cast %59 : vector<1x16x128xbf16> to vector<16x128xbf16>
    %cst_60 = arith.constant dense<0.000000e+00> : vector<16x128xf32>
    %61 = tpu.matmul %60, %2, %cst_60 {dimension_numbers = #tpu.dot_dimension_numbers<[1], [0], [0], [1], [0, 0, 1, 1], [], []>} : vector<16x128xbf16>, vector<128x128xbf16>, vector<16x128xf32> -> vector<16x128xf32>
    %c0_61 = arith.constant 0 : index
    %c20 = arith.constant 20 : index
    %62 = vector.load %arg5[%c0_61, %c20] : memref<16x128xf32, #tpu.memory_space<vmem>>, vector<16x16xf32>
    %63 = vector.extract_strided_slice %61 {offsets = [0, 0], sizes = [16, 16], strides = [1, 1]} : vector<16x128xf32> to vector<16x16xf32>
    %64 = arith.addf %62, %63 : vector<16x16xf32>
    %c0_62 = arith.constant 0 : index
    %c20_63 = arith.constant 20 : index
    %65 = vector.load %arg5[%c0_62, %c20_63] : memref<16x128xf32, #tpu.memory_space<vmem>>, vector<16x16xf32>
    tpu.vector_store %arg5[%c0_62, %c20_63], %64 {strides = array<i32>} : memref<16x128xf32, #tpu.memory_space<vmem>>, vector<16x16xf32>,
    %c9 = arith.constant 9 : index
    %c0_64 = arith.constant 0 : index
    %c0_65 = arith.constant 0 : index
    %66 = vector.load %arg1[%c9, %c0_64, %c0_65] : memref<35x16x128xbf16, #tpu.memory_space<vmem>>, vector<1x16x128xbf16>
    %67 = vector.shape_cast %66 : vector<1x16x128xbf16> to vector<16x128xbf16>
    %cst_66 = arith.constant dense<0.000000e+00> : vector<16x128xf32>
    %68 = tpu.matmul %67, %2, %cst_66 {dimension_numbers = #tpu.dot_dimension_numbers<[1], [0], [0], [1], [0, 0, 1, 1], [], []>} : vector<16x128xbf16>, vector<128x128xbf16>, vector<16x128xf32> -> vector<16x128xf32>
    %c0_67 = arith.constant 0 : index
    %c24 = arith.constant 24 : index
    %69 = vector.load %arg5[%c0_67, %c24] : memref<16x128xf32, #tpu.memory_space<vmem>>, vector<16x16xf32>
    %70 = vector.extract_strided_slice %68 {offsets = [0, 0], sizes = [16, 16], strides = [1, 1]} : vector<16x128xf32> to vector<16x16xf32>
    %71 = arith.addf %69, %70 : vector<16x16xf32>
    %c0_68 = arith.constant 0 : index
    %c24_69 = arith.constant 24 : index
    %72 = vector.load %arg5[%c0_68, %c24_69] : memref<16x128xf32, #tpu.memory_space<vmem>>, vector<16x16xf32>
    tpu.vector_store %arg5[%c0_68, %c24_69], %71 {strides = array<i32>} : memref<16x128xf32, #tpu.memory_space<vmem>>, vector<16x16xf32>,
    %c10 = arith.constant 10 : index
    %c0_70 = arith.constant 0 : index
    %c0_71 = arith.constant 0 : index
    %73 = vector.load %arg1[%c10, %c0_70, %c0_71] : memref<35x16x128xbf16, #tpu.memory_space<vmem>>, vector<1x16x128xbf16>
    %74 = vector.shape_cast %73 : vector<1x16x128xbf16> to vector<16x128xbf16>
    %cst_72 = arith.constant dense<0.000000e+00> : vector<16x128xf32>
    %75 = tpu.matmul %74, %2, %cst_72 {dimension_numbers = #tpu.dot_dimension_numbers<[1], [0], [0], [1], [0, 0, 1, 1], [], []>} : vector<16x128xbf16>, vector<128x128xbf16>, vector<16x128xf32> -> vector<16x128xf32>
    %c0_73 = arith.constant 0 : index
    %c28 = arith.constant 28 : index
    %76 = vector.load %arg5[%c0_73, %c28] : memref<16x128xf32, #tpu.memory_space<vmem>>, vector<16x16xf32>
    %77 = vector.extract_strided_slice %75 {offsets = [0, 0], sizes = [16, 16], strides = [1, 1]} : vector<16x128xf32> to vector<16x16xf32>
    %78 = arith.addf %76, %77 : vector<16x16xf32>
    %c0_74 = arith.constant 0 : index
    %c28_75 = arith.constant 28 : index
    %79 = vector.load %arg5[%c0_74, %c28_75] : memref<16x128xf32, #tpu.memory_space<vmem>>, vector<16x16xf32>
    tpu.vector_store %arg5[%c0_74, %c28_75], %78 {strides = array<i32>} : memref<16x128xf32, #tpu.memory_space<vmem>>, vector<16x16xf32>,
    %c11 = arith.constant 11 : index
    %c0_76 = arith.constant 0 : index
    %c0_77 = arith.constant 0 : index
    %80 = vector.load %arg1[%c11, %c0_76, %c0_77] : memref<35x16x128xbf16, #tpu.memory_space<vmem>>, vector<1x16x128xbf16>
    %81 = vector.shape_cast %80 : vector<1x16x128xbf16> to vector<16x128xbf16>
    %cst_78 = arith.constant dense<0.000000e+00> : vector<16x128xf32>
    %82 = tpu.matmul %81, %2, %cst_78 {dimension_numbers = #tpu.dot_dimension_numbers<[1], [0], [0], [1], [0, 0, 1, 1], [], []>} : vector<16x128xbf16>, vector<128x128xbf16>, vector<16x128xf32> -> vector<16x128xf32>
    %c0_79 = arith.constant 0 : index
    %c32 = arith.constant 32 : index
    %83 = vector.load %arg5[%c0_79, %c32] : memref<16x128xf32, #tpu.memory_space<vmem>>, vector<16x16xf32>
    %84 = vector.extract_strided_slice %82 {offsets = [0, 0], sizes = [16, 16], strides = [1, 1]} : vector<16x128xf32> to vector<16x16xf32>
    %85 = arith.addf %83, %84 : vector<16x16xf32>
    %c0_80 = arith.constant 0 : index
    %c32_81 = arith.constant 32 : index
    %86 = vector.load %arg5[%c0_80, %c32_81] : memref<16x128xf32, #tpu.memory_space<vmem>>, vector<16x16xf32>
    tpu.vector_store %arg5[%c0_80, %c32_81], %85 {strides = array<i32>} : memref<16x128xf32, #tpu.memory_space<vmem>>, vector<16x16xf32>,
    %c12_82 = arith.constant 12 : index
    %c0_83 = arith.constant 0 : index
    %c0_84 = arith.constant 0 : index
    %87 = vector.load %arg1[%c12_82, %c0_83, %c0_84] : memref<35x16x128xbf16, #tpu.memory_space<vmem>>, vector<1x16x128xbf16>
    %88 = vector.shape_cast %87 : vector<1x16x128xbf16> to vector<16x128xbf16>
    %cst_85 = arith.constant dense<0.000000e+00> : vector<16x128xf32>
    %89 = tpu.matmul %88, %2, %cst_85 {dimension_numbers = #tpu.dot_dimension_numbers<[1], [0], [0], [1], [0, 0, 1, 1], [], []>} : vector<16x128xbf16>, vector<128x128xbf16>, vector<16x128xf32> -> vector<16x128xf32>
    %c0_86 = arith.constant 0 : index
    %c36 = arith.constant 36 : index
    %90 = vector.load %arg5[%c0_86, %c36] : memref<16x128xf32, #tpu.memory_space<vmem>>, vector<16x16xf32>
    %91 = vector.extract_strided_slice %89 {offsets = [0, 0], sizes = [16, 16], strides = [1, 1]} : vector<16x128xf32> to vector<16x16xf32>
    %92 = arith.addf %90, %91 : vector<16x16xf32>
    %c0_87 = arith.constant 0 : index
    %c36_88 = arith.constant 36 : index
    %93 = vector.load %arg5[%c0_87, %c36_88] : memref<16x128xf32, #tpu.memory_space<vmem>>, vector<16x16xf32>
    tpu.vector_store %arg5[%c0_87, %c36_88], %92 {strides = array<i32>} : memref<16x128xf32, #tpu.memory_space<vmem>>, vector<16x16xf32>,
    %c13 = arith.constant 13 : index
    %c0_89 = arith.constant 0 : index
    %c0_90 = arith.constant 0 : index
    %94 = vector.load %arg1[%c13, %c0_89, %c0_90] : memref<35x16x128xbf16, #tpu.memory_space<vmem>>, vector<1x16x128xbf16>
    %95 = vector.shape_cast %94 : vector<1x16x128xbf16> to vector<16x128xbf16>
    %cst_91 = arith.constant dense<0.000000e+00> : vector<16x128xf32>
    %96 = tpu.matmul %95, %2, %cst_91 {dimension_numbers = #tpu.dot_dimension_numbers<[1], [0], [0], [1], [0, 0, 1, 1], [], []>} : vector<16x128xbf16>, vector<128x128xbf16>, vector<16x128xf32> -> vector<16x128xf32>
    %c0_92 = arith.constant 0 : index
    %c40 = arith.constant 40 : index
    %97 = vector.load %arg5[%c0_92, %c40] : memref<16x128xf32, #tpu.memory_space<vmem>>, vector<16x16xf32>
    %98 = vector.extract_strided_slice %96 {offsets = [0, 0], sizes = [16, 16], strides = [1, 1]} : vector<16x128xf32> to vector<16x16xf32>
    %99 = arith.addf %97, %98 : vector<16x16xf32>
    %c0_93 = arith.constant 0 : index
    %c40_94 = arith.constant 40 : index
    %100 = vector.load %arg5[%c0_93, %c40_94] : memref<16x128xf32, #tpu.memory_space<vmem>>, vector<16x16xf32>
    tpu.vector_store %arg5[%c0_93, %c40_94], %99 {strides = array<i32>} : memref<16x128xf32, #tpu.memory_space<vmem>>, vector<16x16xf32>,
    %c14 = arith.constant 14 : index
    %c0_95 = arith.constant 0 : index
    %c0_96 = arith.constant 0 : index
    %101 = vector.load %arg1[%c14, %c0_95, %c0_96] : memref<35x16x128xbf16, #tpu.memory_space<vmem>>, vector<1x16x128xbf16>
    %102 = vector.shape_cast %101 : vector<1x16x128xbf16> to vector<16x128xbf16>
    %cst_97 = arith.constant dense<0.000000e+00> : vector<16x128xf32>
    %103 = tpu.matmul %102, %2, %cst_97 {dimension_numbers = #tpu.dot_dimension_numbers<[1], [0], [0], [1], [0, 0, 1, 1], [], []>} : vector<16x128xbf16>, vector<128x128xbf16>, vector<16x128xf32> -> vector<16x128xf32>
    %c0_98 = arith.constant 0 : index
    %c44 = arith.constant 44 : index
    %104 = vector.load %arg5[%c0_98, %c44] : memref<16x128xf32, #tpu.memory_space<vmem>>, vector<16x16xf32>
    %105 = vector.extract_strided_slice %103 {offsets = [0, 0], sizes = [16, 16], strides = [1, 1]} : vector<16x128xf32> to vector<16x16xf32>
    %106 = arith.addf %104, %105 : vector<16x16xf32>
    %c0_99 = arith.constant 0 : index
    %c44_100 = arith.constant 44 : index
    %107 = vector.load %arg5[%c0_99, %c44_100] : memref<16x128xf32, #tpu.memory_space<vmem>>, vector<16x16xf32>
    tpu.vector_store %arg5[%c0_99, %c44_100], %106 {strides = array<i32>} : memref<16x128xf32, #tpu.memory_space<vmem>>, vector<16x16xf32>,
    %c15 = arith.constant 15 : index
    %c0_101 = arith.constant 0 : index
    %c0_102 = arith.constant 0 : index
    %108 = vector.load %arg1[%c15, %c0_101, %c0_102] : memref<35x16x128xbf16, #tpu.memory_space<vmem>>, vector<1x16x128xbf16>
    %109 = vector.shape_cast %108 : vector<1x16x128xbf16> to vector<16x128xbf16>
    %cst_103 = arith.constant dense<0.000000e+00> : vector<16x128xf32>
    %110 = tpu.matmul %109, %2, %cst_103 {dimension_numbers = #tpu.dot_dimension_numbers<[1], [0], [0], [1], [0, 0, 1, 1], [], []>} : vector<16x128xbf16>, vector<128x128xbf16>, vector<16x128xf32> -> vector<16x128xf32>
    %c0_104 = arith.constant 0 : index
    %c48 = arith.constant 48 : index
    %111 = vector.load %arg5[%c0_104, %c48] : memref<16x128xf32, #tpu.memory_space<vmem>>, vector<16x16xf32>
    %112 = vector.extract_strided_slice %110 {offsets = [0, 0], sizes = [16, 16], strides = [1, 1]} : vector<16x128xf32> to vector<16x16xf32>
    %113 = arith.addf %111, %112 : vector<16x16xf32>
    %c0_105 = arith.constant 0 : index
    %c48_106 = arith.constant 48 : index
    %114 = vector.load %arg5[%c0_105, %c48_106] : memref<16x128xf32, #tpu.memory_space<vmem>>, vector<16x16xf32>
    tpu.vector_store %arg5[%c0_105, %c48_106], %113 {strides = array<i32>} : memref<16x128xf32, #tpu.memory_space<vmem>>, vector<16x16xf32>,
    %c16_107 = arith.constant 16 : index
    %c0_108 = arith.constant 0 : index
    %c0_109 = arith.constant 0 : index
    %115 = vector.load %arg1[%c16_107, %c0_108, %c0_109] : memref<35x16x128xbf16, #tpu.memory_space<vmem>>, vector<1x16x128xbf16>
    %116 = vector.shape_cast %115 : vector<1x16x128xbf16> to vector<16x128xbf16>
    %cst_110 = arith.constant dense<0.000000e+00> : vector<16x128xf32>
    %117 = tpu.matmul %116, %2, %cst_110 {dimension_numbers = #tpu.dot_dimension_numbers<[1], [0], [0], [1], [0, 0, 1, 1], [], []>} : vector<16x128xbf16>, vector<128x128xbf16>, vector<16x128xf32> -> vector<16x128xf32>
    %c0_111 = arith.constant 0 : index
    %c52 = arith.constant 52 : index
    %118 = vector.load %arg5[%c0_111, %c52] : memref<16x128xf32, #tpu.memory_space<vmem>>, vector<16x16xf32>
    %119 = vector.extract_strided_slice %117 {offsets = [0, 0], sizes = [16, 16], strides = [1, 1]} : vector<16x128xf32> to vector<16x16xf32>
    %120 = arith.addf %118, %119 : vector<16x16xf32>
    %c0_112 = arith.constant 0 : index
    %c52_113 = arith.constant 52 : index
    %121 = vector.load %arg5[%c0_112, %c52_113] : memref<16x128xf32, #tpu.memory_space<vmem>>, vector<16x16xf32>
    tpu.vector_store %arg5[%c0_112, %c52_113], %120 {strides = array<i32>} : memref<16x128xf32, #tpu.memory_space<vmem>>, vector<16x16xf32>,
    %c17 = arith.constant 17 : index
    %c0_114 = arith.constant 0 : index
    %c0_115 = arith.constant 0 : index
    %122 = vector.load %arg1[%c17, %c0_114, %c0_115] : memref<35x16x128xbf16, #tpu.memory_space<vmem>>, vector<1x16x128xbf16>
    %123 = vector.shape_cast %122 : vector<1x16x128xbf16> to vector<16x128xbf16>
    %cst_116 = arith.constant dense<0.000000e+00> : vector<16x128xf32>
    %124 = tpu.matmul %123, %2, %cst_116 {dimension_numbers = #tpu.dot_dimension_numbers<[1], [0], [0], [1], [0, 0, 1, 1], [], []>} : vector<16x128xbf16>, vector<128x128xbf16>, vector<16x128xf32> -> vector<16x128xf32>
    %c0_117 = arith.constant 0 : index
    %c56 = arith.constant 56 : index
    %125 = vector.load %arg5[%c0_117, %c56] : memref<16x128xf32, #tpu.memory_space<vmem>>, vector<16x16xf32>
    %126 = vector.extract_strided_slice %124 {offsets = [0, 0], sizes = [16, 16], strides = [1, 1]} : vector<16x128xf32> to vector<16x16xf32>
    %127 = arith.addf %125, %126 : vector<16x16xf32>
    %c0_118 = arith.constant 0 : index
    %c56_119 = arith.constant 56 : index
    %128 = vector.load %arg5[%c0_118, %c56_119] : memref<16x128xf32, #tpu.memory_space<vmem>>, vector<16x16xf32>
    tpu.vector_store %arg5[%c0_118, %c56_119], %127 {strides = array<i32>} : memref<16x128xf32, #tpu.memory_space<vmem>>, vector<16x16xf32>,
    %c18 = arith.constant 18 : index
    %c0_120 = arith.constant 0 : index
    %c0_121 = arith.constant 0 : index
    %129 = vector.load %arg1[%c18, %c0_120, %c0_121] : memref<35x16x128xbf16, #tpu.memory_space<vmem>>, vector<1x16x128xbf16>
    %130 = vector.shape_cast %129 : vector<1x16x128xbf16> to vector<16x128xbf16>
    %cst_122 = arith.constant dense<0.000000e+00> : vector<16x128xf32>
    %131 = tpu.matmul %130, %2, %cst_122 {dimension_numbers = #tpu.dot_dimension_numbers<[1], [0], [0], [1], [0, 0, 1, 1], [], []>} : vector<16x128xbf16>, vector<128x128xbf16>, vector<16x128xf32> -> vector<16x128xf32>
    %c0_123 = arith.constant 0 : index
    %c60 = arith.constant 60 : index
    %132 = vector.load %arg5[%c0_123, %c60] : memref<16x128xf32, #tpu.memory_space<vmem>>, vector<16x16xf32>
    %133 = vector.extract_strided_slice %131 {offsets = [0, 0], sizes = [16, 16], strides = [1, 1]} : vector<16x128xf32> to vector<16x16xf32>
    %134 = arith.addf %132, %133 : vector<16x16xf32>
    %c0_124 = arith.constant 0 : index
    %c60_125 = arith.constant 60 : index
    %135 = vector.load %arg5[%c0_124, %c60_125] : memref<16x128xf32, #tpu.memory_space<vmem>>, vector<16x16xf32>
    tpu.vector_store %arg5[%c0_124, %c60_125], %134 {strides = array<i32>} : memref<16x128xf32, #tpu.memory_space<vmem>>, vector<16x16xf32>,
    %c19 = arith.constant 19 : index
    %c0_126 = arith.constant 0 : index
    %c0_127 = arith.constant 0 : index
    %136 = vector.load %arg1[%c19, %c0_126, %c0_127] : memref<35x16x128xbf16, #tpu.memory_space<vmem>>, vector<1x16x128xbf16>
    %137 = vector.shape_cast %136 : vector<1x16x128xbf16> to vector<16x128xbf16>
    %cst_128 = arith.constant dense<0.000000e+00> : vector<16x128xf32>
    %138 = tpu.matmul %137, %2, %cst_128 {dimension_numbers = #tpu.dot_dimension_numbers<[1], [0], [0], [1], [0, 0, 1, 1], [], []>} : vector<16x128xbf16>, vector<128x128xbf16>, vector<16x128xf32> -> vector<16x128xf32>
    %c0_129 = arith.constant 0 : index
    %c64 = arith.constant 64 : index
    %139 = vector.load %arg5[%c0_129, %c64] : memref<16x128xf32, #tpu.memory_space<vmem>>, vector<16x16xf32>
    %140 = vector.extract_strided_slice %138 {offsets = [0, 0], sizes = [16, 16], strides = [1, 1]} : vector<16x128xf32> to vector<16x16xf32>
    %141 = arith.addf %139, %140 : vector<16x16xf32>
    %c0_130 = arith.constant 0 : index
    %c64_131 = arith.constant 64 : index
    %142 = vector.load %arg5[%c0_130, %c64_131] : memref<16x128xf32, #tpu.memory_space<vmem>>, vector<16x16xf32>
    tpu.vector_store %arg5[%c0_130, %c64_131], %141 {strides = array<i32>} : memref<16x128xf32, #tpu.memory_space<vmem>>, vector<16x16xf32>,
    %c20_132 = arith.constant 20 : index
    %c0_133 = arith.constant 0 : index
    %c0_134 = arith.constant 0 : index
    %143 = vector.load %arg1[%c20_132, %c0_133, %c0_134] : memref<35x16x128xbf16, #tpu.memory_space<vmem>>, vector<1x16x128xbf16>
    %144 = vector.shape_cast %143 : vector<1x16x128xbf16> to vector<16x128xbf16>
    %cst_135 = arith.constant dense<0.000000e+00> : vector<16x128xf32>
    %145 = tpu.matmul %144, %2, %cst_135 {dimension_numbers = #tpu.dot_dimension_numbers<[1], [0], [0], [1], [0, 0, 1, 1], [], []>} : vector<16x128xbf16>, vector<128x128xbf16>, vector<16x128xf32> -> vector<16x128xf32>
    %c0_136 = arith.constant 0 : index
    %c68 = arith.constant 68 : index
    %146 = vector.load %arg5[%c0_136, %c68] : memref<16x128xf32, #tpu.memory_space<vmem>>, vector<16x16xf32>
    %147 = vector.extract_strided_slice %145 {offsets = [0, 0], sizes = [16, 16], strides = [1, 1]} : vector<16x128xf32> to vector<16x16xf32>
    %148 = arith.addf %146, %147 : vector<16x16xf32>
    %c0_137 = arith.constant 0 : index
    %c68_138 = arith.constant 68 : index
    %149 = vector.load %arg5[%c0_137, %c68_138] : memref<16x128xf32, #tpu.memory_space<vmem>>, vector<16x16xf32>
    tpu.vector_store %arg5[%c0_137, %c68_138], %148 {strides = array<i32>} : memref<16x128xf32, #tpu.memory_space<vmem>>, vector<16x16xf32>,
    %c21 = arith.constant 21 : index
    %c0_139 = arith.constant 0 : index
    %c0_140 = arith.constant 0 : index
    %150 = vector.load %arg1[%c21, %c0_139, %c0_140] : memref<35x16x128xbf16, #tpu.memory_space<vmem>>, vector<1x16x128xbf16>
    %151 = vector.shape_cast %150 : vector<1x16x128xbf16> to vector<16x128xbf16>
    %cst_141 = arith.constant dense<0.000000e+00> : vector<16x128xf32>
    %152 = tpu.matmul %151, %2, %cst_141 {dimension_numbers = #tpu.dot_dimension_numbers<[1], [0], [0], [1], [0, 0, 1, 1], [], []>} : vector<16x128xbf16>, vector<128x128xbf16>, vector<16x128xf32> -> vector<16x128xf32>
    %c0_142 = arith.constant 0 : index
    %c72 = arith.constant 72 : index
    %153 = vector.load %arg5[%c0_142, %c72] : memref<16x128xf32, #tpu.memory_space<vmem>>, vector<16x16xf32>
    %154 = vector.extract_strided_slice %152 {offsets = [0, 0], sizes = [16, 16], strides = [1, 1]} : vector<16x128xf32> to vector<16x16xf32>
    %155 = arith.addf %153, %154 : vector<16x16xf32>
    %c0_143 = arith.constant 0 : index
    %c72_144 = arith.constant 72 : index
    %156 = vector.load %arg5[%c0_143, %c72_144] : memref<16x128xf32, #tpu.memory_space<vmem>>, vector<16x16xf32>
    tpu.vector_store %arg5[%c0_143, %c72_144], %155 {strides = array<i32>} : memref<16x128xf32, #tpu.memory_space<vmem>>, vector<16x16xf32>,
    %c22 = arith.constant 22 : index
    %c0_145 = arith.constant 0 : index
    %c0_146 = arith.constant 0 : index
    %157 = vector.load %arg1[%c22, %c0_145, %c0_146] : memref<35x16x128xbf16, #tpu.memory_space<vmem>>, vector<1x16x128xbf16>
    %158 = vector.shape_cast %157 : vector<1x16x128xbf16> to vector<16x128xbf16>
    %cst_147 = arith.constant dense<0.000000e+00> : vector<16x128xf32>
    %159 = tpu.matmul %158, %2, %cst_147 {dimension_numbers = #tpu.dot_dimension_numbers<[1], [0], [0], [1], [0, 0, 1, 1], [], []>} : vector<16x128xbf16>, vector<128x128xbf16>, vector<16x128xf32> -> vector<16x128xf32>
    %c0_148 = arith.constant 0 : index
    %c76 = arith.constant 76 : index
    %160 = vector.load %arg5[%c0_148, %c76] : memref<16x128xf32, #tpu.memory_space<vmem>>, vector<16x16xf32>
    %161 = vector.extract_strided_slice %159 {offsets = [0, 0], sizes = [16, 16], strides = [1, 1]} : vector<16x128xf32> to vector<16x16xf32>
    %162 = arith.addf %160, %161 : vector<16x16xf32>
    %c0_149 = arith.constant 0 : index
    %c76_150 = arith.constant 76 : index
    %163 = vector.load %arg5[%c0_149, %c76_150] : memref<16x128xf32, #tpu.memory_space<vmem>>, vector<16x16xf32>
    tpu.vector_store %arg5[%c0_149, %c76_150], %162 {strides = array<i32>} : memref<16x128xf32, #tpu.memory_space<vmem>>, vector<16x16xf32>,
    %c23 = arith.constant 23 : index
    %c0_151 = arith.constant 0 : index
    %c0_152 = arith.constant 0 : index
    %164 = vector.load %arg1[%c23, %c0_151, %c0_152] : memref<35x16x128xbf16, #tpu.memory_space<vmem>>, vector<1x16x128xbf16>
    %165 = vector.shape_cast %164 : vector<1x16x128xbf16> to vector<16x128xbf16>
    %cst_153 = arith.constant dense<0.000000e+00> : vector<16x128xf32>
    %166 = tpu.matmul %165, %2, %cst_153 {dimension_numbers = #tpu.dot_dimension_numbers<[1], [0], [0], [1], [0, 0, 1, 1], [], []>} : vector<16x128xbf16>, vector<128x128xbf16>, vector<16x128xf32> -> vector<16x128xf32>
    %c0_154 = arith.constant 0 : index
    %c80 = arith.constant 80 : index
    %167 = vector.load %arg5[%c0_154, %c80] : memref<16x128xf32, #tpu.memory_space<vmem>>, vector<16x16xf32>
    %168 = vector.extract_strided_slice %166 {offsets = [0, 0], sizes = [16, 16], strides = [1, 1]} : vector<16x128xf32> to vector<16x16xf32>
    %169 = arith.addf %167, %168 : vector<16x16xf32>
    %c0_155 = arith.constant 0 : index
    %c80_156 = arith.constant 80 : index
    %170 = vector.load %arg5[%c0_155, %c80_156] : memref<16x128xf32, #tpu.memory_space<vmem>>, vector<16x16xf32>
    tpu.vector_store %arg5[%c0_155, %c80_156], %169 {strides = array<i32>} : memref<16x128xf32, #tpu.memory_space<vmem>>, vector<16x16xf32>,
    %c24_157 = arith.constant 24 : index
    %c0_158 = arith.constant 0 : index
    %c0_159 = arith.constant 0 : index
    %171 = vector.load %arg1[%c24_157, %c0_158, %c0_159] : memref<35x16x128xbf16, #tpu.memory_space<vmem>>, vector<1x16x128xbf16>
    %172 = vector.shape_cast %171 : vector<1x16x128xbf16> to vector<16x128xbf16>
    %cst_160 = arith.constant dense<0.000000e+00> : vector<16x128xf32>
    %173 = tpu.matmul %172, %2, %cst_160 {dimension_numbers = #tpu.dot_dimension_numbers<[1], [0], [0], [1], [0, 0, 1, 1], [], []>} : vector<16x128xbf16>, vector<128x128xbf16>, vector<16x128xf32> -> vector<16x128xf32>
    %c0_161 = arith.constant 0 : index
    %c84 = arith.constant 84 : index
    %174 = vector.load %arg5[%c0_161, %c84] : memref<16x128xf32, #tpu.memory_space<vmem>>, vector<16x16xf32>
    %175 = vector.extract_strided_slice %173 {offsets = [0, 0], sizes = [16, 16], strides = [1, 1]} : vector<16x128xf32> to vector<16x16xf32>
    %176 = arith.addf %174, %175 : vector<16x16xf32>
    %c0_162 = arith.constant 0 : index
    %c84_163 = arith.constant 84 : index
    %177 = vector.load %arg5[%c0_162, %c84_163] : memref<16x128xf32, #tpu.memory_space<vmem>>, vector<16x16xf32>
    tpu.vector_store %arg5[%c0_162, %c84_163], %176 {strides = array<i32>} : memref<16x128xf32, #tpu.memory_space<vmem>>, vector<16x16xf32>,
    %c25 = arith.constant 25 : index
    %c0_164 = arith.constant 0 : index
    %c0_165 = arith.constant 0 : index
    %178 = vector.load %arg1[%c25, %c0_164, %c0_165] : memref<35x16x128xbf16, #tpu.memory_space<vmem>>, vector<1x16x128xbf16>
    %179 = vector.shape_cast %178 : vector<1x16x128xbf16> to vector<16x128xbf16>
    %cst_166 = arith.constant dense<0.000000e+00> : vector<16x128xf32>
    %180 = tpu.matmul %179, %2, %cst_166 {dimension_numbers = #tpu.dot_dimension_numbers<[1], [0], [0], [1], [0, 0, 1, 1], [], []>} : vector<16x128xbf16>, vector<128x128xbf16>, vector<16x128xf32> -> vector<16x128xf32>
    %c0_167 = arith.constant 0 : index
    %c88 = arith.constant 88 : index
    %181 = vector.load %arg5[%c0_167, %c88] : memref<16x128xf32, #tpu.memory_space<vmem>>, vector<16x16xf32>
    %182 = vector.extract_strided_slice %180 {offsets = [0, 0], sizes = [16, 16], strides = [1, 1]} : vector<16x128xf32> to vector<16x16xf32>
    %183 = arith.addf %181, %182 : vector<16x16xf32>
    %c0_168 = arith.constant 0 : index
    %c88_169 = arith.constant 88 : index
    %184 = vector.load %arg5[%c0_168, %c88_169] : memref<16x128xf32, #tpu.memory_space<vmem>>, vector<16x16xf32>
    tpu.vector_store %arg5[%c0_168, %c88_169], %183 {strides = array<i32>} : memref<16x128xf32, #tpu.memory_space<vmem>>, vector<16x16xf32>,
    %c26 = arith.constant 26 : index
    %c0_170 = arith.constant 0 : index
    %c0_171 = arith.constant 0 : index
    %185 = vector.load %arg1[%c26, %c0_170, %c0_171] : memref<35x16x128xbf16, #tpu.memory_space<vmem>>, vector<1x16x128xbf16>
    %186 = vector.shape_cast %185 : vector<1x16x128xbf16> to vector<16x128xbf16>
    %cst_172 = arith.constant dense<0.000000e+00> : vector<16x128xf32>
    %187 = tpu.matmul %186, %2, %cst_172 {dimension_numbers = #tpu.dot_dimension_numbers<[1], [0], [0], [1], [0, 0, 1, 1], [], []>} : vector<16x128xbf16>, vector<128x128xbf16>, vector<16x128xf32> -> vector<16x128xf32>
    %c0_173 = arith.constant 0 : index
    %c92 = arith.constant 92 : index
    %188 = vector.load %arg5[%c0_173, %c92] : memref<16x128xf32, #tpu.memory_space<vmem>>, vector<16x16xf32>
    %189 = vector.extract_strided_slice %187 {offsets = [0, 0], sizes = [16, 16], strides = [1, 1]} : vector<16x128xf32> to vector<16x16xf32>
    %190 = arith.addf %188, %189 : vector<16x16xf32>
    %c0_174 = arith.constant 0 : index
    %c92_175 = arith.constant 92 : index
    %191 = vector.load %arg5[%c0_174, %c92_175] : memref<16x128xf32, #tpu.memory_space<vmem>>, vector<16x16xf32>
    tpu.vector_store %arg5[%c0_174, %c92_175], %190 {strides = array<i32>} : memref<16x128xf32, #tpu.memory_space<vmem>>, vector<16x16xf32>,
    %c27 = arith.constant 27 : index
    %c0_176 = arith.constant 0 : index
    %c0_177 = arith.constant 0 : index
    %192 = vector.load %arg1[%c27, %c0_176, %c0_177] : memref<35x16x128xbf16, #tpu.memory_space<vmem>>, vector<1x16x128xbf16>
    %193 = vector.shape_cast %192 : vector<1x16x128xbf16> to vector<16x128xbf16>
    %cst_178 = arith.constant dense<0.000000e+00> : vector<16x128xf32>
    %194 = tpu.matmul %193, %2, %cst_178 {dimension_numbers = #tpu.dot_dimension_numbers<[1], [0], [0], [1], [0, 0, 1, 1], [], []>} : vector<16x128xbf16>, vector<128x128xbf16>, vector<16x128xf32> -> vector<16x128xf32>
    %c0_179 = arith.constant 0 : index
    %c96 = arith.constant 96 : index
    %195 = vector.load %arg5[%c0_179, %c96] : memref<16x128xf32, #tpu.memory_space<vmem>>, vector<16x16xf32>
    %196 = vector.extract_strided_slice %194 {offsets = [0, 0], sizes = [16, 16], strides = [1, 1]} : vector<16x128xf32> to vector<16x16xf32>
    %197 = arith.addf %195, %196 : vector<16x16xf32>
    %c0_180 = arith.constant 0 : index
    %c96_181 = arith.constant 96 : index
    %198 = vector.load %arg5[%c0_180, %c96_181] : memref<16x128xf32, #tpu.memory_space<vmem>>, vector<16x16xf32>
    tpu.vector_store %arg5[%c0_180, %c96_181], %197 {strides = array<i32>} : memref<16x128xf32, #tpu.memory_space<vmem>>, vector<16x16xf32>,
    %c28_182 = arith.constant 28 : index
    %c0_183 = arith.constant 0 : index
    %c0_184 = arith.constant 0 : index
    %199 = vector.load %arg1[%c28_182, %c0_183, %c0_184] : memref<35x16x128xbf16, #tpu.memory_space<vmem>>, vector<1x16x128xbf16>
    %200 = vector.shape_cast %199 : vector<1x16x128xbf16> to vector<16x128xbf16>
    %cst_185 = arith.constant dense<0.000000e+00> : vector<16x128xf32>
    %201 = tpu.matmul %200, %2, %cst_185 {dimension_numbers = #tpu.dot_dimension_numbers<[1], [0], [0], [1], [0, 0, 1, 1], [], []>} : vector<16x128xbf16>, vector<128x128xbf16>, vector<16x128xf32> -> vector<16x128xf32>
    %c0_186 = arith.constant 0 : index
    %c100 = arith.constant 100 : index
    %202 = vector.load %arg5[%c0_186, %c100] : memref<16x128xf32, #tpu.memory_space<vmem>>, vector<16x16xf32>
    %203 = vector.extract_strided_slice %201 {offsets = [0, 0], sizes = [16, 16], strides = [1, 1]} : vector<16x128xf32> to vector<16x16xf32>
    %204 = arith.addf %202, %203 : vector<16x16xf32>
    %c0_187 = arith.constant 0 : index
    %c100_188 = arith.constant 100 : index
    %205 = vector.load %arg5[%c0_187, %c100_188] : memref<16x128xf32, #tpu.memory_space<vmem>>, vector<16x16xf32>
    tpu.vector_store %arg5[%c0_187, %c100_188], %204 {strides = array<i32>} : memref<16x128xf32, #tpu.memory_space<vmem>>, vector<16x16xf32>,
    %c29 = arith.constant 29 : index
    %c0_189 = arith.constant 0 : index
    %c0_190 = arith.constant 0 : index
    %206 = vector.load %arg1[%c29, %c0_189, %c0_190] : memref<35x16x128xbf16, #tpu.memory_space<vmem>>, vector<1x16x128xbf16>
    %207 = vector.shape_cast %206 : vector<1x16x128xbf16> to vector<16x128xbf16>
    %cst_191 = arith.constant dense<0.000000e+00> : vector<16x128xf32>
    %208 = tpu.matmul %207, %2, %cst_191 {dimension_numbers = #tpu.dot_dimension_numbers<[1], [0], [0], [1], [0, 0, 1, 1], [], []>} : vector<16x128xbf16>, vector<128x128xbf16>, vector<16x128xf32> -> vector<16x128xf32>
    %c0_192 = arith.constant 0 : index
    %c104 = arith.constant 104 : index
    %209 = vector.load %arg5[%c0_192, %c104] : memref<16x128xf32, #tpu.memory_space<vmem>>, vector<16x16xf32>
    %210 = vector.extract_strided_slice %208 {offsets = [0, 0], sizes = [16, 16], strides = [1, 1]} : vector<16x128xf32> to vector<16x16xf32>
    %211 = arith.addf %209, %210 : vector<16x16xf32>
    %c0_193 = arith.constant 0 : index
    %c104_194 = arith.constant 104 : index
    %212 = vector.load %arg5[%c0_193, %c104_194] : memref<16x128xf32, #tpu.memory_space<vmem>>, vector<16x16xf32>
    tpu.vector_store %arg5[%c0_193, %c104_194], %211 {strides = array<i32>} : memref<16x128xf32, #tpu.memory_space<vmem>>, vector<16x16xf32>,
    %c30 = arith.constant 30 : index
    %c0_195 = arith.constant 0 : index
    %c0_196 = arith.constant 0 : index
    %213 = vector.load %arg1[%c30, %c0_195, %c0_196] : memref<35x16x128xbf16, #tpu.memory_space<vmem>>, vector<1x16x128xbf16>
    %214 = vector.shape_cast %213 : vector<1x16x128xbf16> to vector<16x128xbf16>
    %cst_197 = arith.constant dense<0.000000e+00> : vector<16x128xf32>
    %215 = tpu.matmul %214, %2, %cst_197 {dimension_numbers = #tpu.dot_dimension_numbers<[1], [0], [0], [1], [0, 0, 1, 1], [], []>} : vector<16x128xbf16>, vector<128x128xbf16>, vector<16x128xf32> -> vector<16x128xf32>
    %c0_198 = arith.constant 0 : index
    %c108 = arith.constant 108 : index
    %216 = vector.load %arg5[%c0_198, %c108] : memref<16x128xf32, #tpu.memory_space<vmem>>, vector<16x16xf32>
    %217 = vector.extract_strided_slice %215 {offsets = [0, 0], sizes = [16, 16], strides = [1, 1]} : vector<16x128xf32> to vector<16x16xf32>
    %218 = arith.addf %216, %217 : vector<16x16xf32>
    %c0_199 = arith.constant 0 : index
    %c108_200 = arith.constant 108 : index
    %219 = vector.load %arg5[%c0_199, %c108_200] : memref<16x128xf32, #tpu.memory_space<vmem>>, vector<16x16xf32>
    tpu.vector_store %arg5[%c0_199, %c108_200], %218 {strides = array<i32>} : memref<16x128xf32, #tpu.memory_space<vmem>>, vector<16x16xf32>,
    %c31 = arith.constant 31 : index
    %c0_201 = arith.constant 0 : index
    %c0_202 = arith.constant 0 : index
    %220 = vector.load %arg1[%c31, %c0_201, %c0_202] : memref<35x16x128xbf16, #tpu.memory_space<vmem>>, vector<1x16x128xbf16>
    %221 = vector.shape_cast %220 : vector<1x16x128xbf16> to vector<16x128xbf16>
    %cst_203 = arith.constant dense<0.000000e+00> : vector<16x128xf32>
    %222 = tpu.matmul %221, %2, %cst_203 {dimension_numbers = #tpu.dot_dimension_numbers<[1], [0], [0], [1], [0, 0, 1, 1], [], []>} : vector<16x128xbf16>, vector<128x128xbf16>, vector<16x128xf32> -> vector<16x128xf32>
    %c0_204 = arith.constant 0 : index
    %c112 = arith.constant 112 : index
    %223 = vector.load %arg5[%c0_204, %c112] : memref<16x128xf32, #tpu.memory_space<vmem>>, vector<16x16xf32>
    %224 = vector.extract_strided_slice %222 {offsets = [0, 0], sizes = [16, 16], strides = [1, 1]} : vector<16x128xf32> to vector<16x16xf32>
    %225 = arith.addf %223, %224 : vector<16x16xf32>
    %c0_205 = arith.constant 0 : index
    %c112_206 = arith.constant 112 : index
    %226 = vector.load %arg5[%c0_205, %c112_206] : memref<16x128xf32, #tpu.memory_space<vmem>>, vector<16x16xf32>
    tpu.vector_store %arg5[%c0_205, %c112_206], %225 {strides = array<i32>} : memref<16x128xf32, #tpu.memory_space<vmem>>, vector<16x16xf32>,
    %c32_207 = arith.constant 32 : index
    %c0_208 = arith.constant 0 : index
    %c0_209 = arith.constant 0 : index
    %227 = vector.load %arg1[%c32_207, %c0_208, %c0_209] : memref<35x16x128xbf16, #tpu.memory_space<vmem>>, vector<1x16x128xbf16>
    %228 = vector.shape_cast %227 : vector<1x16x128xbf16> to vector<16x128xbf16>
    %cst_210 = arith.constant dense<0.000000e+00> : vector<16x128xf32>
    %229 = tpu.matmul %228, %2, %cst_210 {dimension_numbers = #tpu.dot_dimension_numbers<[1], [0], [0], [1], [0, 0, 1, 1], [], []>} : vector<16x128xbf16>, vector<128x128xbf16>, vector<16x128xf32> -> vector<16x128xf32>
    %c0_211 = arith.constant 0 : index
    %c116 = arith.constant 116 : index
    %230 = vector.load %arg5[%c0_211, %c116] : memref<16x128xf32, #tpu.memory_space<vmem>>, vector<16x12xf32>
    %231 = vector.extract_strided_slice %229 {offsets = [0, 0], sizes = [16, 12], strides = [1, 1]} : vector<16x128xf32> to vector<16x12xf32>
    %232 = arith.addf %230, %231 : vector<16x12xf32>
    %c0_212 = arith.constant 0 : index
    %c116_213 = arith.constant 116 : index
    %233 = vector.load %arg5[%c0_212, %c116_213] : memref<16x128xf32, #tpu.memory_space<vmem>>, vector<16x12xf32>
    tpu.vector_store %arg5[%c0_212, %c116_213], %232 {strides = array<i32>} : memref<16x128xf32, #tpu.memory_space<vmem>>, vector<16x12xf32>,
    %c33 = arith.constant 33 : index
    %c0_214 = arith.constant 0 : index
    %c0_215 = arith.constant 0 : index
    %234 = vector.load %arg1[%c33, %c0_214, %c0_215] : memref<35x16x128xbf16, #tpu.memory_space<vmem>>, vector<1x16x128xbf16>
    %235 = vector.shape_cast %234 : vector<1x16x128xbf16> to vector<16x128xbf16>
    %cst_216 = arith.constant dense<0.000000e+00> : vector<16x128xf32>
    %236 = tpu.matmul %235, %2, %cst_216 {dimension_numbers = #tpu.dot_dimension_numbers<[1], [0], [0], [1], [0, 0, 1, 1], [], []>} : vector<16x128xbf16>, vector<128x128xbf16>, vector<16x128xf32> -> vector<16x128xf32>
    %c0_217 = arith.constant 0 : index
    %c120 = arith.constant 120 : index
    %237 = vector.load %arg5[%c0_217, %c120] : memref<16x128xf32, #tpu.memory_space<vmem>>, vector<16x8xf32>
    %238 = vector.extract_strided_slice %236 {offsets = [0, 0], sizes = [16, 8], strides = [1, 1]} : vector<16x128xf32> to vector<16x8xf32>
    %239 = arith.addf %237, %238 : vector<16x8xf32>
    %c0_218 = arith.constant 0 : index
    %c120_219 = arith.constant 120 : index
    %240 = vector.load %arg5[%c0_218, %c120_219] : memref<16x128xf32, #tpu.memory_space<vmem>>, vector<16x8xf32>
    tpu.vector_store %arg5[%c0_218, %c120_219], %239 {strides = array<i32>} : memref<16x128xf32, #tpu.memory_space<vmem>>, vector<16x8xf32>,
    %c34 = arith.constant 34 : index
    %c0_220 = arith.constant 0 : index
    %c0_221 = arith.constant 0 : index
    %241 = vector.load %arg1[%c34, %c0_220, %c0_221] : memref<35x16x128xbf16, #tpu.memory_space<vmem>>, vector<1x16x128xbf16>
    %242 = vector.shape_cast %241 : vector<1x16x128xbf16> to vector<16x128xbf16>
    %cst_222 = arith.constant dense<0.000000e+00> : vector<16x128xf32>
    %243 = tpu.matmul %242, %2, %cst_222 {dimension_numbers = #tpu.dot_dimension_numbers<[1], [0], [0], [1], [0, 0, 1, 1], [], []>} : vector<16x128xbf16>, vector<128x128xbf16>, vector<16x128xf32> -> vector<16x128xf32>
    %c0_223 = arith.constant 0 : index
    %c124 = arith.constant 124 : index
    %244 = vector.load %arg5[%c0_223, %c124] : memref<16x128xf32, #tpu.memory_space<vmem>>, vector<16x4xf32>
    %245 = vector.extract_strided_slice %243 {offsets = [0, 0], sizes = [16, 4], strides = [1, 1]} : vector<16x128xf32> to vector<16x4xf32>
    %246 = arith.addf %244, %245 : vector<16x4xf32>
    %c0_224 = arith.constant 0 : index
    %c124_225 = arith.constant 124 : index
    %247 = vector.load %arg5[%c0_224, %c124_225] : memref<16x128xf32, #tpu.memory_space<vmem>>, vector<16x4xf32>
    tpu.vector_store %arg5[%c0_224, %c124_225], %246 {strides = array<i32>} : memref<16x128xf32, #tpu.memory_space<vmem>>, vector<16x4xf32>,
    %c0_226 = arith.constant 0 : index
    %c0_227 = arith.constant 0 : index
    %248 = vector.load %arg5[%c0_226, %c0_227] : memref<16x128xf32, #tpu.memory_space<vmem>>, vector<16x128xf32>
    %c0_228 = arith.constant 0 : index
    %c0_229 = arith.constant 0 : index
    %249 = vector.load %arg3[%c0_228, %c0_229] : memref<1x128xf32, #tpu.memory_space<vmem>>, vector<1x128xf32>
    %250 = vector.broadcast %249 : vector<1x128xf32> to vector<16x128xf32>
    %251 = arith.mulf %248, %250 : vector<16x128xf32>
    %252 = math.absf %251 : vector<16x128xf32>
    %253 = vector.shape_cast %252 : vector<16x128xf32> to vector<1x16x128xf32>
    %cst_230 = arith.constant dense<0.000000e+00> : vector<1xf32>
    %254 = vector.multi_reduction <add>, %253, %cst_230 [1, 2] : vector<1x16x128xf32> to vector<1xf32>
    %255 = vector.shape_cast %254 : vector<1xf32> to vector<1x1x1xf32>
    %256 = vector.extract %255[0, 0, 0] : f32 from vector<1x1x1xf32>
    %257 = vector.broadcast %256 : f32 to vector<1x8x128xf32>
    %c0_231 = arith.constant 0 : index
    %c0_232 = arith.constant 0 : index
    %c0_233 = arith.constant 0 : index
    %258 = vector.load %arg4[%c0_231, %c0_232, %c0_233] : memref<1x8x128xf32, #tpu.memory_space<vmem>>, vector<1x8x128xf32>
    tpu.vector_store %arg4[%c0_231, %c0_232, %c0_233], %257 {strides = array<i32>} : memref<1x8x128xf32, #tpu.memory_space<vmem>>, vector<1x8x128xf32>,
    return
  }
  func.func @transform_0(%arg0: i32) -> (i32, i32, i32) {
    %c0_i32 = arith.constant 0 : i32
    %c0_i32_0 = arith.constant 0 : i32
    %c0_i32_1 = arith.constant 0 : i32
    return %arg0, %c0_i32, %c0_i32_0 : i32, i32, i32
  }
  func.func @transform_1(%arg0: i32) -> (i32, i32) {
    %c0_i32 = arith.constant 0 : i32
    %c0_i32_0 = arith.constant 0 : i32
    %c0_i32_1 = arith.constant 0 : i32
    return %c0_i32, %c0_i32_0 : i32, i32
  }
  func.func @transform_2(%arg0: i32) -> (i32, i32) {
    %c0_i32 = arith.constant 0 : i32
    %c0_i32_0 = arith.constant 0 : i32
    return %c0_i32, %arg0 : i32, i32
  }
  func.func @transform_3(%arg0: i32) -> (i32, i32, i32) {
    %c0_i32 = arith.constant 0 : i32
    %c0_i32_0 = arith.constant 0 : i32
    %c0_i32_1 = arith.constant 0 : i32
    return %arg0, %c0_i32, %c0_i32_0 : i32, i32, i32
  }
}

</mosaic_0001>

<llo_original>
// kernel: tpu_custom_call.1
$region0: #{tpu_custom_call.1}
  #allocation0 [shape = 'u32[]', space=smem, size = 0x4, offset = 0x4, fixed_abs, tag = 'smem constant byte address 0x4 - core index']
  #allocation1 [shape = 'u32[72,128]{1,0:T(1,128)}', space=vmem, size = 0x9000, scoped, tag = 'internal scratch']
  #allocation2 [shape = 'f32[16,128]{1,0:T(8,128)}', space=vmem, size = 0x2000, scoped, tag = 'scratch operand']
  %s0 = inlined_call_operand.hbm [shape: bf16[35,16,128], index: 0, kind: input, shape index: {}]
  %s1 = inlined_call_operand.hbm [shape: bf16[128,128], index: 1, kind: input, shape index: {}]
  %s2 = inlined_call_operand.vmem [shape: f32[1,128], index: 2, kind: input, shape index: {}]
  %s3 = inlined_call_operand.hbm [shape: f32[1,8,128], index: 3, kind: output, shape index: {}]
  %s4 = sld [smem:[#allocation0]]
  $region30: #{tpu_custom_call.1} parent=0
    _
  %s6 = ssub.s32 1, %s4
  %s7 = scalar_select 0, %s6, %s4
  $region1: #{tpu_custom_call.1} parent=0
    #allocation3 [shape = 'u8[143360]{0}', space=vmem, size = 0x23000, scoped, tag = 'input window, operand 0, single buffered']
    #allocation4 [shape = 's32[1]{0}', space=sflag, size = 0x4, scoped, tag = 'scoped memory for tpu_custom_call.1']
    #allocation5 [shape = 's32[1]{0}', space=sflag, size = 0x4, scoped, tag = 'scoped memory for tpu_custom_call.1']
    #allocation6 [shape = 'u8[32768]{0}', space=vmem, size = 0x8000, scoped, tag = 'input window, operand 1, single buffered']
    #allocation7 [shape = 's32[1]{0}', space=sflag, size = 0x4, scoped, tag = 'scoped memory for tpu_custom_call.1']
    #allocation8 [shape = 'u8[4096]{0}', space=vmem, size = 0x1000, scoped, tag = 'output window, operand 0, single buffered']
    %8 = vsyncpa [#allocation4], 0
    %9 = vsyncpa [#allocation7], 0
    %10 = vsyncpa [#allocation5], 0
    // Predicated region
    $region2: #{tpu_custom_call.1} parent=1 // pred_check
      _
    $region3: #{tpu_custom_call.1} parent=1 // pred_check_branch
      %12 = sbr.rel (0) target = $region5
    $region4: #{tpu_custom_call.1} parent=1 // pred_region
      %14 = vsyncadd [#allocation4], 0
      %s15 = sshll.u32 %s0, 4
      %s16 = int_to_ptr.hbm [resolvable:$true] %s15
      %s17 = sshll.u32 [#allocation3], 4
      %s18 = int_to_ptr.vmem [resolvable:$true] %s17
      %23 = dma.hbm_to_vmem [thread:$0]  %s16, 4480, %s18, [#allocation4], 64, 64, 4
    $region5: #{tpu_custom_call.1} parent=1 // pred_fallthru
      _
    // Predicated region
    $region6: #{tpu_custom_call.1} parent=1 // pred_check
      _
    $region7: #{tpu_custom_call.1} parent=1 // pred_check_branch
      %25 = sbr.rel (0) target = $region9
    $region8: #{tpu_custom_call.1} parent=1 // pred_region
      %27 = vsyncadd [#allocation7], 0
      %s28 = sshll.u32 %s1, 4
      %s29 = int_to_ptr.hbm [resolvable:$true] %s28
      %s30 = sshll.u32 [#allocation6], 4
      %s31 = int_to_ptr.vmem [resolvable:$true] %s30
      %36 = dma.hbm_to_vmem [thread:$0]  %s29, 1024, %s31, [#allocation7], 64, 64, 4
    $region9: #{tpu_custom_call.1} parent=1 // pred_fallthru
      _
    // Predicated region
    $region10: #{tpu_custom_call.1} parent=1 // pred_check
      _
    $region11: #{tpu_custom_call.1} parent=1 // pred_check_branch
      %38 = sbr.rel (0) target = $region13
    $region12: #{tpu_custom_call.1} parent=1 // pred_region
      _
    $region13: #{tpu_custom_call.1} parent=1 // pred_fallthru
      _
    // Predicated region
    $region14: #{tpu_custom_call.1} parent=1 // pred_check
      _
    $region15: #{tpu_custom_call.1} parent=1 // pred_check_branch
      %40 = sbr.rel (0) target = $region17
    $region16: #{tpu_custom_call.1} parent=1 // pred_region
      %42 = dma.done [#allocation4], 4480
    $region17: #{tpu_custom_call.1} parent=1 // pred_fallthru
      _
    // Predicated region
    $region18: #{tpu_custom_call.1} parent=1 // pred_check
      _
    $region19: #{tpu_custom_call.1} parent=1 // pred_check_branch
      %44 = sbr.rel (0) target = $region21
    $region20: #{tpu_custom_call.1} parent=1 // pred_region
      %46 = dma.done [#allocation7], 1024
    $region21: #{tpu_custom_call.1} parent=1 // pred_fallthru
      _
    %47 = vst [vmem:[#allocation2] sm:$0xff] 0.0
    %48 = vst [vmem:[#allocation2 + $0x8] sm:$0xff] 0.0
    %v49 = vld [vmem:[#allocation6] sm:$0xf]
    %v50 = vld [vmem:[#allocation6 + $0x4] sm:$0xf]
    %v51 = vld [vmem:[#allocation6 + $0x8] sm:$0xf]
    %v52 = vld [vmem:[#allocation6 + $0xc] sm:$0xf]
    %v53 = vld [vmem:[#allocation6 + $0x10] sm:$0xf]
    %v54 = vld [vmem:[#allocation6 + $0x14] sm:$0xf]
    %v55 = vld [vmem:[#allocation6 + $0x18] sm:$0xf]
    %v56 = vld [vmem:[#allocation6 + $0x1c] sm:$0xf]
    %v57 = vld [vmem:[#allocation6 + $0x20] sm:$0xf]
    %v58 = vld [vmem:[#allocation6 + $0x24] sm:$0xf]
    %v59 = vld [vmem:[#allocation6 + $0x28] sm:$0xf]
    %v60 = vld [vmem:[#allocation6 + $0x2c] sm:$0xf]
    %v61 = vld [vmem:[#allocation6 + $0x30] sm:$0xf]
    %v62 = vld [vmem:[#allocation6 + $0x34] sm:$0xf]
    %v63 = vld [vmem:[#allocation6 + $0x38] sm:$0xf]
    %v64 = vld [vmem:[#allocation6 + $0x3c] sm:$0xf]
    %v65 = vld [vmem:[#allocation3] sm:$0xf]
    %v66 = vld [vmem:[#allocation3 + $0x4] sm:$0xf]
    %v69 = vunpack.c.l.b16 %v65
    %v70 = vunpack.c.l.b16 %v66
    %v71 = vpack.c.b16 %v70, %v69
    %v89 = vunpack.c.l.b16 %v49
    %v90 = vunpack.c.l.b16 %v50
    %v91 = vunpack.c.l.b16 %v51
    %v92 = vunpack.c.l.b16 %v52
    %v93 = vunpack.c.l.b16 %v53
    %v94 = vunpack.c.l.b16 %v54
    %v95 = vunpack.c.l.b16 %v55
    %v96 = vunpack.c.l.b16 %v56
    %v97 = vunpack.c.l.b16 %v57
    %v98 = vunpack.c.l.b16 %v58
    %v99 = vunpack.c.l.b16 %v59
    %v100 = vunpack.c.l.b16 %v60
    %v101 = vunpack.c.l.b16 %v61
    %v102 = vunpack.c.l.b16 %v62
    %v103 = vunpack.c.l.b16 %v63
    %v104 = vunpack.c.l.b16 %v64
    %v105 = vpack.c.b16 %v90, %v89
    %v106 = vpack.c.b16 %v92, %v91
    %v107 = vpack.c.b16 %v94, %v93
    %v108 = vpack.c.b16 %v96, %v95
    %v109 = vpack.c.b16 %v98, %v97
    %v110 = vpack.c.b16 %v100, %v99
    %v111 = vpack.c.b16 %v102, %v101
    %v112 = vpack.c.b16 %v104, %v103
    %121 = vmatpush.bf16.msra.mxu0 %v112
    %122 = vmatpush.bf16.msra.mxu0 %v111
    %123 = vmatpush.bf16.msra.mxu0 %v110
    %124 = vmatpush.bf16.msra.mxu0 %v109
    %125 = vmatpush.bf16.msra.mxu0 %v108
    %126 = vmatpush.bf16.msra.mxu0 %v107
    %127 = vmatpush.bf16.msra.mxu0 %v106
    %128 = vmatpush.bf16.msra.mxu0 %v105
    %129 = vmatmul.bf16.gmra.mxu0 %v71
    %v130 = vpop.f32.mrf.mxu0
    %v131 = vadd.f32 0.0, %v130
    %v132 = vpop.f32.mrf.mxu0
    %v133 = vadd.f32 0.0, %v132
    %134 = vdwg.mxu0
    %v135 = vld [vmem:[#allocation2] sm:$0xff]
    %v136 = vld [vmem:[#allocation2 + $0x8] sm:$0xff]
    %139 = vrot.lane.b32.xlu0 %v131, 116
    %v140 = vpop.permute.xlu0 %139
    %141 = vrot.lane.b32.xlu0 %v133, 116
    %v142 = vpop.permute.xlu0 %141
    %v145 = vadd.f32 %v135, %v140
    %v146 = vadd.f32 %v136, %v142
    %vm147 = vcmask 31744
    %148 = vst.msk [vmem:[#allocation2] sm:$0xff] %vm147, %v145
    %149 = vst.msk [vmem:[#allocation2 + $0x8] sm:$0xff] %vm147, %v146
    %s150 = scalar_lea.vmem [#allocation3], 8
    %v151 = vld [vmem:[%s150] sm:$0xf]
    %v152 = vld [vmem:[%s150 + $0x4] sm:$0xf]
    %v155 = vunpack.c.l.b16 %v151
    %v156 = vunpack.c.l.b16 %v152
    %v157 = vpack.c.b16 %v156, %v155
    %159 = vmatpush.bf16.msra.mxu0 %v112
    %160 = vmatpush.bf16.msra.mxu0 %v111
    %161 = vmatpush.bf16.msra.mxu0 %v110
    %162 = vmatpush.bf16.msra.mxu0 %v109
    %163 = vmatpush.bf16.msra.mxu0 %v108
    %164 = vmatpush.bf16.msra.mxu0 %v107
    %165 = vmatpush.bf16.msra.mxu0 %v106
    %166 = vmatpush.bf16.msra.mxu0 %v105
    %167 = vmatmul.bf16.gmra.mxu0 %v157
    %v168 = vpop.f32.mrf.mxu0
    %v169 = vadd.f32 0.0, %v168
    %v170 = vpop.f32.mrf.mxu0
    %v171 = vadd.f32 0.0, %v170
    %172 = vdwg.mxu0
    %v173 = vld [vmem:[#allocation2] sm:$0xff]
    %v174 = vld [vmem:[#allocation2 + $0x8] sm:$0xff]
    %177 = vrot.lane.b32.xlu0 %v169, 120
    %v178 = vpop.permute.xlu0 %177
    %179 = vrot.lane.b32.xlu0 %v171, 120
    %v180 = vpop.permute.xlu0 %179
    %v183 = vadd.f32 %v173, %v178
    %v184 = vadd.f32 %v174, %v180
    %vm185 = vcmask 64512
    %186 = vst.msk [vmem:[#allocation2] sm:$0xff] %vm185, %v183
    %187 = vst.msk [vmem:[#allocation2 + $0x8] sm:$0xff] %vm185, %v184
    %s188 = scalar_lea.vmem [#allocation3], 16
    %v189 = vld [vmem:[%s188] sm:$0xf]
    %v190 = vld [vmem:[%s188 + $0x4] sm:$0xf]
    %v193 = vunpack.c.l.b16 %v189
    %v194 = vunpack.c.l.b16 %v190
    %v195 = vpack.c.b16 %v194, %v193
    %197 = vmatpush.bf16.msra.mxu0 %v112
    %198 = vmatpush.bf16.msra.mxu0 %v111
    %199 = vmatpush.bf16.msra.mxu0 %v110
    %200 = vmatpush.bf16.msra.mxu0 %v109
    %201 = vmatpush.bf16.msra.mxu0 %v108
    %202 = vmatpush.bf16.msra.mxu0 %v107
    %203 = vmatpush.bf16.msra.mxu0 %v106
    %204 = vmatpush.bf16.msra.mxu0 %v105
    %205 = vmatmul.bf16.gmra.mxu0 %v195
    %v206 = vpop.f32.mrf.mxu0
    %v207 = vadd.f32 0.0, %v206
    %v208 = vpop.f32.mrf.mxu0
    %v209 = vadd.f32 0.0, %v208
    %210 = vdwg.mxu0
    %v211 = vld [vmem:[#allocation2] sm:$0xff]
    %v212 = vld [vmem:[#allocation2 + $0x8] sm:$0xff]
    %215 = vrot.lane.b32.xlu0 %v207, 124
    %v216 = vpop.permute.xlu0 %215
    %217 = vrot.lane.b32.xlu0 %v209, 124
    %v218 = vpop.permute.xlu0 %217
    %v221 = vadd.f32 %v211, %v216
    %v222 = vadd.f32 %v212, %v218
    %vm223 = vcmask 97280
    %224 = vst.msk [vmem:[#allocation2] sm:$0xff] %vm223, %v221
    %225 = vst.msk [vmem:[#allocation2 + $0x8] sm:$0xff] %vm223, %v222
    %s226 = scalar_lea.vmem [#allocation3], 24
    %v227 = vld [vmem:[%s226] sm:$0xf]
    %v228 = vld [vmem:[%s226 + $0x4] sm:$0xf]
    %v231 = vunpack.c.l.b16 %v227
    %v232 = vunpack.c.l.b16 %v228
    %v233 = vpack.c.b16 %v232, %v231
    %235 = vmatpush.bf16.msra.mxu0 %v112
    %236 = vmatpush.bf16.msra.mxu0 %v111
    %237 = vmatpush.bf16.msra.mxu0 %v110
    %238 = vmatpush.bf16.msra.mxu0 %v109
    %239 = vmatpush.bf16.msra.mxu0 %v108
    %240 = vmatpush.bf16.msra.mxu0 %v107
    %241 = vmatpush.bf16.msra.mxu0 %v106
    %242 = vmatpush.bf16.msra.mxu0 %v105
    %243 = vmatmul.bf16.gmra.mxu0 %v233
    %v244 = vpop.f32.mrf.mxu0
    %v245 = vadd.f32 0.0, %v244
    %v246 = vpop.f32.mrf.mxu0
    %v247 = vadd.f32 0.0, %v246
    %248 = vdwg.mxu0
    %v249 = vld [vmem:[#allocation2] sm:$0xff]
    %v250 = vld [vmem:[#allocation2 + $0x8] sm:$0xff]
    %v251 = vadd.f32 %v249, %v245
    %v252 = vadd.f32 %v250, %v247
    %vm253 = vcmask 130048
    %254 = vst.msk [vmem:[#allocation2] sm:$0xff] %vm253, %v251
    %255 = vst.msk [vmem:[#allocation2 + $0x8] sm:$0xff] %vm253, %v252
    %s256 = scalar_lea.vmem [#allocation3], 32
    %v257 = vld [vmem:[%s256] sm:$0xf]
    %v258 = vld [vmem:[%s256 + $0x4] sm:$0xf]
    %v261 = vunpack.c.l.b16 %v257
    %v262 = vunpack.c.l.b16 %v258
    %v263 = vpack.c.b16 %v262, %v261
    %265 = vmatpush.bf16.msra.mxu0 %v112
    %266 = vmatpush.bf16.msra.mxu0 %v111
    %267 = vmatpush.bf16.msra.mxu0 %v110
    %268 = vmatpush.bf16.msra.mxu0 %v109
    %269 = vmatpush.bf16.msra.mxu0 %v108
    %270 = vmatpush.bf16.msra.mxu0 %v107
    %271 = vmatpush.bf16.msra.mxu0 %v106
    %272 = vmatpush.bf16.msra.mxu0 %v105
    %273 = vmatmul.bf16.gmra.mxu0 %v263
    %v274 = vpop.f32.mrf.mxu0
    %v275 = vadd.f32 0.0, %v274
    %v276 = vpop.f32.mrf.mxu0
    %v277 = vadd.f32 0.0, %v276
    %278 = vdwg.mxu0
    %v279 = vld [vmem:[#allocation2] sm:$0xff]
    %v280 = vld [vmem:[#allocation2 + $0x8] sm:$0xff]
    %283 = vrot.lane.b32.xlu0 %v275, 4
    %v284 = vpop.permute.xlu0 %283
    %285 = vrot.lane.b32.xlu0 %v277, 4
    %v286 = vpop.permute.xlu0 %285
    %v289 = vadd.f32 %v279, %v284
    %v290 = vadd.f32 %v280, %v286
    %vm291 = vcmask 162848
    %292 = vst.msk [vmem:[#allocation2] sm:$0xff] %vm291, %v289
    %293 = vst.msk [vmem:[#allocation2 + $0x8] sm:$0xff] %vm291, %v290
    %s294 = scalar_lea.vmem [#allocation3], 40
    %v295 = vld [vmem:[%s294] sm:$0xf]
    %v296 = vld [vmem:[%s294 + $0x4] sm:$0xf]
    %v299 = vunpack.c.l.b16 %v295
    %v300 = vunpack.c.l.b16 %v296
    %v301 = vpack.c.b16 %v300, %v299
    %303 = vmatpush.bf16.msra.mxu0 %v112
    %304 = vmatpush.bf16.msra.mxu0 %v111
    %305 = vmatpush.bf16.msra.mxu0 %v110
    %306 = vmatpush.bf16.msra.mxu0 %v109
    %307 = vmatpush.bf16.msra.mxu0 %v108
    %308 = vmatpush.bf16.msra.mxu0 %v107
    %309 = vmatpush.bf16.msra.mxu0 %v106
    %310 = vmatpush.bf16.msra.mxu0 %v105
    %311 = vmatmul.bf16.gmra.mxu0 %v301
    %v312 = vpop.f32.mrf.mxu0
    %v313 = vadd.f32 0.0, %v312
    %v314 = vpop.f32.mrf.mxu0
    %v315 = vadd.f32 0.0, %v314
    %316 = vdwg.mxu0
    %v317 = vld [vmem:[#allocation2] sm:$0xff]
    %v318 = vld [vmem:[#allocation2 + $0x8] sm:$0xff]
    %321 = vrot.lane.b32.xlu0 %v313, 8
    %v322 = vpop.permute.xlu0 %321
    %323 = vrot.lane.b32.xlu0 %v315, 8
    %v324 = vpop.permute.xlu0 %323
    %v327 = vadd.f32 %v317, %v322
    %v328 = vadd.f32 %v318, %v324
    %vm329 = vcmask 195648
    %330 = vst.msk [vmem:[#allocation2] sm:$0xff] %vm329, %v327
    %331 = vst.msk [vmem:[#allocation2 + $0x8] sm:$0xff] %vm329, %v328
    %s332 = scalar_lea.vmem [#allocation3], 48
    %v333 = vld [vmem:[%s332] sm:$0xf]
    %v334 = vld [vmem:[%s332 + $0x4] sm:$0xf]
    %v337 = vunpack.c.l.b16 %v333
    %v338 = vunpack.c.l.b16 %v334
    %v339 = vpack.c.b16 %v338, %v337
    %341 = vmatpush.bf16.msra.mxu0 %v112
    %342 = vmatpush.bf16.msra.mxu0 %v111
    %343 = vmatpush.bf16.msra.mxu0 %v110
    %344 = vmatpush.bf16.msra.mxu0 %v109
    %345 = vmatpush.bf16.msra.mxu0 %v108
    %346 = vmatpush.bf16.msra.mxu0 %v107
    %347 = vmatpush.bf16.msra.mxu0 %v106
    %348 = vmatpush.bf16.msra.mxu0 %v105
    %349 = vmatmul.bf16.gmra.mxu0 %v339
    %v350 = vpop.f32.mrf.mxu0
    %v351 = vadd.f32 0.0, %v350
    %v352 = vpop.f32.mrf.mxu0
    %v353 = vadd.f32 0.0, %v352
    %354 = vdwg.mxu0
    %v355 = vld [vmem:[#allocation2] sm:$0xff]
    %v356 = vld [vmem:[#allocation2 + $0x8] sm:$0xff]
    %359 = vrot.lane.b32.xlu0 %v351, 12
    %v360 = vpop.permute.xlu0 %359
    %361 = vrot.lane.b32.xlu0 %v353, 12
    %v362 = vpop.permute.xlu0 %361
    %v365 = vadd.f32 %v355, %v360
    %v366 = vadd.f32 %v356, %v362
    %vm367 = vcmask 228448
    %368 = vst.msk [vmem:[#allocation2] sm:$0xff] %vm367, %v365
    %369 = vst.msk [vmem:[#allocation2 + $0x8] sm:$0xff] %vm367, %v366
    %s370 = scalar_lea.vmem [#allocation3], 56
    %v371 = vld [vmem:[%s370] sm:$0xf]
    %v372 = vld [vmem:[%s370 + $0x4] sm:$0xf]
    %v375 = vunpack.c.l.b16 %v371
    %v376 = vunpack.c.l.b16 %v372
    %v377 = vpack.c.b16 %v376, %v375
    %379 = vmatpush.bf16.msra.mxu0 %v112
    %380 = vmatpush.bf16.msra.mxu0 %v111
    %381 = vmatpush.bf16.msra.mxu0 %v110
    %382 = vmatpush.bf16.msra.mxu0 %v109
    %383 = vmatpush.bf16.msra.mxu0 %v108
    %384 = vmatpush.bf16.msra.mxu0 %v107
    %385 = vmatpush.bf16.msra.mxu0 %v106
    %386 = vmatpush.bf16.msra.mxu0 %v105
    %387 = vmatmul.bf16.gmra.mxu0 %v377
    %v388 = vpop.f32.mrf.mxu0
    %v389 = vadd.f32 0.0, %v388
    %v390 = vpop.f32.mrf.mxu0
    %v391 = vadd.f32 0.0, %v390
    %392 = vdwg.mxu0
    %v393 = vld [vmem:[#allocation2] sm:$0xff]
    %v394 = vld [vmem:[#allocation2 + $0x8] sm:$0xff]
    %397 = vrot.lane.b32.xlu0 %v389, 16
    %v398 = vpop.permute.xlu0 %397
    %399 = vrot.lane.b32.xlu0 %v391, 16
    %v400 = vpop.permute.xlu0 %399
    %v403 = vadd.f32 %v393, %v398
    %v404 = vadd.f32 %v394, %v400
    %vm405 = vcmask 261248
    %406 = vst.msk [vmem:[#allocation2] sm:$0xff] %vm405, %v403
    %407 = vst.msk [vmem:[#allocation2 + $0x8] sm:$0xff] %vm405, %v404
    %s408 = scalar_lea.vmem [#allocation3], 64
    %v409 = vld [vmem:[%s408] sm:$0xf]
    %v410 = vld [vmem:[%s408 + $0x4] sm:$0xf]
    %v413 = vunpack.c.l.b16 %v409
    %v414 = vunpack.c.l.b16 %v410
    %v415 = vpack.c.b16 %v414, %v413
    %417 = vmatpush.bf16.msra.mxu0 %v112
    %418 = vmatpush.bf16.msra.mxu0 %v111
    %419 = vmatpush.bf16.msra.mxu0 %v110
    %420 = vmatpush.bf16.msra.mxu0 %v109
    %421 = vmatpush.bf16.msra.mxu0 %v108
    %422 = vmatpush.bf16.msra.mxu0 %v107
    %423 = vmatpush.bf16.msra.mxu0 %v106
    %424 = vmatpush.bf16.msra.mxu0 %v105
    %425 = vmatmul.bf16.gmra.mxu0 %v415
    %v426 = vpop.f32.mrf.mxu0
    %v427 = vadd.f32 0.0, %v426
    %v428 = vpop.f32.mrf.mxu0
    %v429 = vadd.f32 0.0, %v428
    %430 = vdwg.mxu0
    %v431 = vld [vmem:[#allocation2] sm:$0xff]
    %v432 = vld [vmem:[#allocation2 + $0x8] sm:$0xff]
    %435 = vrot.lane.b32.xlu0 %v427, 20
    %v436 = vpop.permute.xlu0 %435
    %437 = vrot.lane.b32.xlu0 %v429, 20
    %v438 = vpop.permute.xlu0 %437
    %v441 = vadd.f32 %v431, %v436
    %v442 = vadd.f32 %v432, %v438
    %vm443 = vcmask 294048
    %444 = vst.msk [vmem:[#allocation2] sm:$0xff] %vm443, %v441
    %445 = vst.msk [vmem:[#allocation2 + $0x8] sm:$0xff] %vm443, %v442
    %s446 = scalar_lea.vmem [#allocation3], 72
    %v447 = vld [vmem:[%s446] sm:$0xf]
    %v448 = vld [vmem:[%s446 + $0x4] sm:$0xf]
    %v451 = vunpack.c.l.b16 %v447
    %v452 = vunpack.c.l.b16 %v448
    %v453 = vpack.c.b16 %v452, %v451
    %455 = vmatpush.bf16.msra.mxu0 %v112
    %456 = vmatpush.bf16.msra.mxu0 %v111
    %457 = vmatpush.bf16.msra.mxu0 %v110
    %458 = vmatpush.bf16.msra.mxu0 %v109
    %459 = vmatpush.bf16.msra.mxu0 %v108
    %460 = vmatpush.bf16.msra.mxu0 %v107
    %461 = vmatpush.bf16.msra.mxu0 %v106
    %462 = vmatpush.bf16.msra.mxu0 %v105
    %463 = vmatmul.bf16.gmra.mxu0 %v453
    %v464 = vpop.f32.mrf.mxu0
    %v465 = vadd.f32 0.0, %v464
    %v466 = vpop.f32.mrf.mxu0
    %v467 = vadd.f32 0.0, %v466
    %468 = vdwg.mxu0
    %v469 = vld [vmem:[#allocation2] sm:$0xff]
    %v470 = vld [vmem:[#allocation2 + $0x8] sm:$0xff]
    %473 = vrot.lane.b32.xlu0 %v465, 24
    %v474 = vpop.permute.xlu0 %473
    %475 = vrot.lane.b32.xlu0 %v467, 24
    %v476 = vpop.permute.xlu0 %475
    %v479 = vadd.f32 %v469, %v474
    %v480 = vadd.f32 %v470, %v476
    %vm481 = vcmask 326848
    %482 = vst.msk [vmem:[#allocation2] sm:$0xff] %vm481, %v479
    %483 = vst.msk [vmem:[#allocation2 + $0x8] sm:$0xff] %vm481, %v480
    %s484 = scalar_lea.vmem [#allocation3], 80
    %v485 = vld [vmem:[%s484] sm:$0xf]
    %v486 = vld [vmem:[%s484 + $0x4] sm:$0xf]
    %v489 = vunpack.c.l.b16 %v485
    %v490 = vunpack.c.l.b16 %v486
    %v491 = vpack.c.b16 %v490, %v489
    %493 = vmatpush.bf16.msra.mxu0 %v112
    %494 = vmatpush.bf16.msra.mxu0 %v111
    %495 = vmatpush.bf16.msra.mxu0 %v110
    %496 = vmatpush.bf16.msra.mxu0 %v109
    %497 = vmatpush.bf16.msra.mxu0 %v108
    %498 = vmatpush.bf16.msra.mxu0 %v107
    %499 = vmatpush.bf16.msra.mxu0 %v106
    %500 = vmatpush.bf16.msra.mxu0 %v105
    %501 = vmatmul.bf16.gmra.mxu0 %v491
    %v502 = vpop.f32.mrf.mxu0
    %v503 = vadd.f32 0.0, %v502
    %v504 = vpop.f32.mrf.mxu0
    %v505 = vadd.f32 0.0, %v504
    %506 = vdwg.mxu0
    %v507 = vld [vmem:[#allocation2] sm:$0xff]
    %v508 = vld [vmem:[#allocation2 + $0x8] sm:$0xff]
    %511 = vrot.lane.b32.xlu0 %v503, 28
    %v512 = vpop.permute.xlu0 %511
    %513 = vrot.lane.b32.xlu0 %v505, 28
    %v514 = vpop.permute.xlu0 %513
    %v517 = vadd.f32 %v507, %v512
    %v518 = vadd.f32 %v508, %v514
    %vm519 = vcmask 359648
    %520 = vst.msk [vmem:[#allocation2] sm:$0xff] %vm519, %v517
    %521 = vst.msk [vmem:[#allocation2 + $0x8] sm:$0xff] %vm519, %v518
    %s522 = scalar_lea.vmem [#allocation3], 88
    %v523 = vld [vmem:[%s522] sm:$0xf]
    %v524 = vld [vmem:[%s522 + $0x4] sm:$0xf]
    %v527 = vunpack.c.l.b16 %v523
    %v528 = vunpack.c.l.b16 %v524
    %v529 = vpack.c.b16 %v528, %v527
    %531 = vmatpush.bf16.msra.mxu0 %v112
    %532 = vmatpush.bf16.msra.mxu0 %v111
    %533 = vmatpush.bf16.msra.mxu0 %v110
    %534 = vmatpush.bf16.msra.mxu0 %v109
    %535 = vmatpush.bf16.msra.mxu0 %v108
    %536 = vmatpush.bf16.msra.mxu0 %v107
    %537 = vmatpush.bf16.msra.mxu0 %v106
    %538 = vmatpush.bf16.msra.mxu0 %v105
    %539 = vmatmul.bf16.gmra.mxu0 %v529
    %v540 = vpop.f32.mrf.mxu0
    %v541 = vadd.f32 0.0, %v540
    %v542 = vpop.f32.mrf.mxu0
    %v543 = vadd.f32 0.0, %v542
    %544 = vdwg.mxu0
    %v545 = vld [vmem:[#allocation2] sm:$0xff]
    %v546 = vld [vmem:[#allocation2 + $0x8] sm:$0xff]
    %549 = vrot.lane.b32.xlu0 %v541, 32
    %v550 = vpop.permute.xlu0 %549
    %551 = vrot.lane.b32.xlu0 %v543, 32
    %v552 = vpop.permute.xlu0 %551
    %v555 = vadd.f32 %v545, %v550
    %v556 = vadd.f32 %v546, %v552
    %vm557 = vcmask 392448
    %558 = vst.msk [vmem:[#allocation2] sm:$0xff] %vm557, %v555
    %559 = vst.msk [vmem:[#allocation2 + $0x8] sm:$0xff] %vm557, %v556
    %s560 = scalar_lea.vmem [#allocation3], 96
    %v561 = vld [vmem:[%s560] sm:$0xf]
    %v562 = vld [vmem:[%s560 + $0x4] sm:$0xf]
    %v565 = vunpack.c.l.b16 %v561
    %v566 = vunpack.c.l.b16 %v562
    %v567 = vpack.c.b16 %v566, %v565
    %569 = vmatpush.bf16.msra.mxu0 %v112
    %570 = vmatpush.bf16.msra.mxu0 %v111
    %571 = vmatpush.bf16.msra.mxu0 %v110
    %572 = vmatpush.bf16.msra.mxu0 %v109
    %573 = vmatpush.bf16.msra.mxu0 %v108
    %574 = vmatpush.bf16.msra.mxu0 %v107
    %575 = vmatpush.bf16.msra.mxu0 %v106
    %576 = vmatpush.bf16.msra.mxu0 %v105
    %577 = vmatmul.bf16.gmra.mxu0 %v567
    %v578 = vpop.f32.mrf.mxu0
    %v579 = vadd.f32 0.0, %v578
    %v580 = vpop.f32.mrf.mxu0
    %v581 = vadd.f32 0.0, %v580
    %582 = vdwg.mxu0
    %v583 = vld [vmem:[#allocation2] sm:$0xff]
    %v584 = vld [vmem:[#allocation2 + $0x8] sm:$0xff]
    %587 = vrot.lane.b32.xlu0 %v579, 36
    %v588 = vpop.permute.xlu0 %587
    %589 = vrot.lane.b32.xlu0 %v581, 36
    %v590 = vpop.permute.xlu0 %589
    %v593 = vadd.f32 %v583, %v588
    %v594 = vadd.f32 %v584, %v590
    %vm595 = vcmask 425248
    %596 = vst.msk [vmem:[#allocation2] sm:$0xff] %vm595, %v593
    %597 = vst.msk [vmem:[#allocation2 + $0x8] sm:$0xff] %vm595, %v594
    %s598 = scalar_lea.vmem [#allocation3], 104
    %v599 = vld [vmem:[%s598] sm:$0xf]
    %v600 = vld [vmem:[%s598 + $0x4] sm:$0xf]
    %v603 = vunpack.c.l.b16 %v599
    %v604 = vunpack.c.l.b16 %v600
    %v605 = vpack.c.b16 %v604, %v603
    %607 = vmatpush.bf16.msra.mxu0 %v112
    %608 = vmatpush.bf16.msra.mxu0 %v111
    %609 = vmatpush.bf16.msra.mxu0 %v110
    %610 = vmatpush.bf16.msra.mxu0 %v109
    %611 = vmatpush.bf16.msra.mxu0 %v108
    %612 = vmatpush.bf16.msra.mxu0 %v107
    %613 = vmatpush.bf16.msra.mxu0 %v106
    %614 = vmatpush.bf16.msra.mxu0 %v105
    %615 = vmatmul.bf16.gmra.mxu0 %v605
    %v616 = vpop.f32.mrf.mxu0
    %v617 = vadd.f32 0.0, %v616
    %v618 = vpop.f32.mrf.mxu0
    %v619 = vadd.f32 0.0, %v618
    %620 = vdwg.mxu0
    %v621 = vld [vmem:[#allocation2] sm:$0xff]
    %v622 = vld [vmem:[#allocation2 + $0x8] sm:$0xff]
    %625 = vrot.lane.b32.xlu0 %v617, 40
    %v626 = vpop.permute.xlu0 %625
    %627 = vrot.lane.b32.xlu0 %v619, 40
    %v628 = vpop.permute.xlu0 %627
    %v631 = vadd.f32 %v621, %v626
    %v632 = vadd.f32 %v622, %v628
    %vm633 = vcmask 458048
    %634 = vst.msk [vmem:[#allocation2] sm:$0xff] %vm633, %v631
    %635 = vst.msk [vmem:[#allocation2 + $0x8] sm:$0xff] %vm633, %v632
    %s636 = scalar_lea.vmem [#allocation3], 112
    %v637 = vld [vmem:[%s636] sm:$0xf]
    %v638 = vld [vmem:[%s636 + $0x4] sm:$0xf]
    %v641 = vunpack.c.l.b16 %v637
    %v642 = vunpack.c.l.b16 %v638
    %v643 = vpack.c.b16 %v642, %v641
    %645 = vmatpush.bf16.msra.mxu0 %v112
    %646 = vmatpush.bf16.msra.mxu0 %v111
    %647 = vmatpush.bf16.msra.mxu0 %v110
    %648 = vmatpush.bf16.msra.mxu0 %v109
    %649 = vmatpush.bf16.msra.mxu0 %v108
    %650 = vmatpush.bf16.msra.mxu0 %v107
    %651 = vmatpush.bf16.msra.mxu0 %v106
    %652 = vmatpush.bf16.msra.mxu0 %v105
    %653 = vmatmul.bf16.gmra.mxu0 %v643
    %v654 = vpop.f32.mrf.mxu0
    %v655 = vadd.f32 0.0, %v654
    %v656 = vpop.f32.mrf.mxu0
    %v657 = vadd.f32 0.0, %v656
    %658 = vdwg.mxu0
    %v659 = vld [vmem:[#allocation2] sm:$0xff]
    %v660 = vld [vmem:[#allocation2 + $0x8] sm:$0xff]
    %663 = vrot.lane.b32.xlu0 %v655, 44
    %v664 = vpop.permute.xlu0 %663
    %665 = vrot.lane.b32.xlu0 %v657, 44
    %v666 = vpop.permute.xlu0 %665
    %v669 = vadd.f32 %v659, %v664
    %v670 = vadd.f32 %v660, %v666
    %vm671 = vcmask 490848
    %672 = vst.msk [vmem:[#allocation2] sm:$0xff] %vm671, %v669
    %673 = vst.msk [vmem:[#allocation2 + $0x8] sm:$0xff] %vm671, %v670
    %s674 = scalar_lea.vmem [#allocation3], 120
    %v675 = vld [vmem:[%s674] sm:$0xf]
    %v676 = vld [vmem:[%s674 + $0x4] sm:$0xf]
    %v679 = vunpack.c.l.b16 %v675
    %v680 = vunpack.c.l.b16 %v676
    %v681 = vpack.c.b16 %v680, %v679
    %683 = vmatpush.bf16.msra.mxu0 %v112
    %684 = vmatpush.bf16.msra.mxu0 %v111
    %685 = vmatpush.bf16.msra.mxu0 %v110
    %686 = vmatpush.bf16.msra.mxu0 %v109
    %687 = vmatpush.bf16.msra.mxu0 %v108
    %688 = vmatpush.bf16.msra.mxu0 %v107
    %689 = vmatpush.bf16.msra.mxu0 %v106
    %690 = vmatpush.bf16.msra.mxu0 %v105
    %691 = vmatmul.bf16.gmra.mxu0 %v681
    %v692 = vpop.f32.mrf.mxu0
    %v693 = vadd.f32 0.0, %v692
    %v694 = vpop.f32.mrf.mxu0
    %v695 = vadd.f32 0.0, %v694
    %696 = vdwg.mxu0
    %v697 = vld [vmem:[#allocation2] sm:$0xff]
    %v698 = vld [vmem:[#allocation2 + $0x8] sm:$0xff]
    %701 = vrot.lane.b32.xlu0 %v693, 48
    %v702 = vpop.permute.xlu0 %701
    %703 = vrot.lane.b32.xlu0 %v695, 48
    %v704 = vpop.permute.xlu0 %703
    %v707 = vadd.f32 %v697, %v702
    %v708 = vadd.f32 %v698, %v704
    %vm709 = vcmask 523648
    %710 = vst.msk [vmem:[#allocation2] sm:$0xff] %vm709, %v707
    %711 = vst.msk [vmem:[#allocation2 + $0x8] sm:$0xff] %vm709, %v708
    %s712 = scalar_lea.vmem [#allocation3], 128
    %v713 = vld [vmem:[%s712] sm:$0xf]
    %v714 = vld [vmem:[%s712 + $0x4] sm:$0xf]
    %v717 = vunpack.c.l.b16 %v713
    %v718 = vunpack.c.l.b16 %v714
    %v719 = vpack.c.b16 %v718, %v717
    %721 = vmatpush.bf16.msra.mxu0 %v112
    %722 = vmatpush.bf16.msra.mxu0 %v111
    %723 = vmatpush.bf16.msra.mxu0 %v110
    %724 = vmatpush.bf16.msra.mxu0 %v109
    %725 = vmatpush.bf16.msra.mxu0 %v108
    %726 = vmatpush.bf16.msra.mxu0 %v107
    %727 = vmatpush.bf16.msra.mxu0 %v106
    %728 = vmatpush.bf16.msra.mxu0 %v105
    %729 = vmatmul.bf16.gmra.mxu0 %v719
    %v730 = vpop.f32.mrf.mxu0
    %v731 = vadd.f32 0.0, %v730
    %v732 = vpop.f32.mrf.mxu0
    %v733 = vadd.f32 0.0, %v732
    %734 = vdwg.mxu0
    %v735 = vld [vmem:[#allocation2] sm:$0xff]
    %v736 = vld [vmem:[#allocation2 + $0x8] sm:$0xff]
    %739 = vrot.lane.b32.xlu0 %v731, 52
    %v740 = vpop.permute.xlu0 %739
    %741 = vrot.lane.b32.xlu0 %v733, 52
    %v742 = vpop.permute.xlu0 %741
    %v745 = vadd.f32 %v735, %v740
    %v746 = vadd.f32 %v736, %v742
    %vm747 = vcmask 556448
    %748 = vst.msk [vmem:[#allocation2] sm:$0xff] %vm747, %v745
    %749 = vst.msk [vmem:[#allocation2 + $0x8] sm:$0xff] %vm747, %v746
    %s750 = scalar_lea.vmem [#allocation3], 136
    %v751 = vld [vmem:[%s750] sm:$0xf]
    %v752 = vld [vmem:[%s750 + $0x4] sm:$0xf]
    %v755 = vunpack.c.l.b16 %v751
    %v756 = vunpack.c.l.b16 %v752
    %v757 = vpack.c.b16 %v756, %v755
    %759 = vmatpush.bf16.msra.mxu0 %v112
    %760 = vmatpush.bf16.msra.mxu0 %v111
    %761 = vmatpush.bf16.msra.mxu0 %v110
    %762 = vmatpush.bf16.msra.mxu0 %v109
    %763 = vmatpush.bf16.msra.mxu0 %v108
    %764 = vmatpush.bf16.msra.mxu0 %v107
    %765 = vmatpush.bf16.msra.mxu0 %v106
    %766 = vmatpush.bf16.msra.mxu0 %v105
    %767 = vmatmul.bf16.gmra.mxu0 %v757
    %v768 = vpop.f32.mrf.mxu0
    %v769 = vadd.f32 0.0, %v768
    %v770 = vpop.f32.mrf.mxu0
    %v771 = vadd.f32 0.0, %v770
    %772 = vdwg.mxu0
    %v773 = vld [vmem:[#allocation2] sm:$0xff]
    %v774 = vld [vmem:[#allocation2 + $0x8] sm:$0xff]
    %777 = vrot.lane.b32.xlu0 %v769, 56
    %v778 = vpop.permute.xlu0 %777
    %779 = vrot.lane.b32.xlu0 %v771, 56
    %v780 = vpop.permute.xlu0 %779
    %v783 = vadd.f32 %v773, %v778
    %v784 = vadd.f32 %v774, %v780
    %vm785 = vcmask 589248
    %786 = vst.msk [vmem:[#allocation2] sm:$0xff] %vm785, %v783
    %787 = vst.msk [vmem:[#allocation2 + $0x8] sm:$0xff] %vm785, %v784
    %s788 = scalar_lea.vmem [#allocation3], 144
    %v789 = vld [vmem:[%s788] sm:$0xf]
    %v790 = vld [vmem:[%s788 + $0x4] sm:$0xf]
    %v793 = vunpack.c.l.b16 %v789
    %v794 = vunpack.c.l.b16 %v790
    %v795 = vpack.c.b16 %v794, %v793
    %797 = vmatpush.bf16.msra.mxu0 %v112
    %798 = vmatpush.bf16.msra.mxu0 %v111
    %799 = vmatpush.bf16.msra.mxu0 %v110
    %800 = vmatpush.bf16.msra.mxu0 %v109
    %801 = vmatpush.bf16.msra.mxu0 %v108
    %802 = vmatpush.bf16.msra.mxu0 %v107
    %803 = vmatpush.bf16.msra.mxu0 %v106
    %804 = vmatpush.bf16.msra.mxu0 %v105
    %805 = vmatmul.bf16.gmra.mxu0 %v795
    %v806 = vpop.f32.mrf.mxu0
    %v807 = vadd.f32 0.0, %v806
    %v808 = vpop.f32.mrf.mxu0
    %v809 = vadd.f32 0.0, %v808
    %810 = vdwg.mxu0
    %v811 = vld [vmem:[#allocation2] sm:$0xff]
    %v812 = vld [vmem:[#allocation2 + $0x8] sm:$0xff]
    %815 = vrot.lane.b32.xlu0 %v807, 60
    %v816 = vpop.permute.xlu0 %815
    %817 = vrot.lane.b32.xlu0 %v809, 60
    %v818 = vpop.permute.xlu0 %817
    %v821 = vadd.f32 %v811, %v816
    %v822 = vadd.f32 %v812, %v818
    %vm823 = vcmask 622048
    %824 = vst.msk [vmem:[#allocation2] sm:$0xff] %vm823, %v821
    %825 = vst.msk [vmem:[#allocation2 + $0x8] sm:$0xff] %vm823, %v822
    %s826 = scalar_lea.vmem [#allocation3], 152
    %v827 = vld [vmem:[%s826] sm:$0xf]
    %v828 = vld [vmem:[%s826 + $0x4] sm:$0xf]
    %v831 = vunpack.c.l.b16 %v827
    %v832 = vunpack.c.l.b16 %v828
    %v833 = vpack.c.b16 %v832, %v831
    %835 = vmatpush.bf16.msra.mxu0 %v112
    %836 = vmatpush.bf16.msra.mxu0 %v111
    %837 = vmatpush.bf16.msra.mxu0 %v110
    %838 = vmatpush.bf16.msra.mxu0 %v109
    %839 = vmatpush.bf16.msra.mxu0 %v108
    %840 = vmatpush.bf16.msra.mxu0 %v107
    %841 = vmatpush.bf16.msra.mxu0 %v106
    %842 = vmatpush.bf16.msra.mxu0 %v105
    %843 = vmatmul.bf16.gmra.mxu0 %v833
    %v844 = vpop.f32.mrf.mxu0
    %v845 = vadd.f32 0.0, %v844
    %v846 = vpop.f32.mrf.mxu0
    %v847 = vadd.f32 0.0, %v846
    %848 = vdwg.mxu0
    %v849 = vld [vmem:[#allocation2] sm:$0xff]
    %v850 = vld [vmem:[#allocation2 + $0x8] sm:$0xff]
    %853 = vrot.lane.b32.xlu0 %v845, 64
    %v854 = vpop.permute.xlu0 %853
    %855 = vrot.lane.b32.xlu0 %v847, 64
    %v856 = vpop.permute.xlu0 %855
    %v859 = vadd.f32 %v849, %v854
    %v860 = vadd.f32 %v850, %v856
    %vm861 = vcmask 654848
    %862 = vst.msk [vmem:[#allocation2] sm:$0xff] %vm861, %v859
    %863 = vst.msk [vmem:[#allocation2 + $0x8] sm:$0xff] %vm861, %v860
    %s864 = scalar_lea.vmem [#allocation3], 160
    %v865 = vld [vmem:[%s864] sm:$0xf]
    %v866 = vld [vmem:[%s864 + $0x4] sm:$0xf]
    %v869 = vunpack.c.l.b16 %v865
    %v870 = vunpack.c.l.b16 %v866
    %v871 = vpack.c.b16 %v870, %v869
    %873 = vmatpush.bf16.msra.mxu0 %v112
    %874 = vmatpush.bf16.msra.mxu0 %v111
    %875 = vmatpush.bf16.msra.mxu0 %v110
    %876 = vmatpush.bf16.msra.mxu0 %v109
    %877 = vmatpush.bf16.msra.mxu0 %v108
    %878 = vmatpush.bf16.msra.mxu0 %v107
    %879 = vmatpush.bf16.msra.mxu0 %v106
    %880 = vmatpush.bf16.msra.mxu0 %v105
    %881 = vmatmul.bf16.gmra.mxu0 %v871
    %v882 = vpop.f32.mrf.mxu0
    %v883 = vadd.f32 0.0, %v882
    %v884 = vpop.f32.mrf.mxu0
    %v885 = vadd.f32 0.0, %v884
    %886 = vdwg.mxu0
    %v887 = vld [vmem:[#allocation2] sm:$0xff]
    %v888 = vld [vmem:[#allocation2 + $0x8] sm:$0xff]
    %891 = vrot.lane.b32.xlu0 %v883, 68
    %v892 = vpop.permute.xlu0 %891
    %893 = vrot.lane.b32.xlu0 %v885, 68
    %v894 = vpop.permute.xlu0 %893
    %v897 = vadd.f32 %v887, %v892
    %v898 = vadd.f32 %v888, %v894
    %vm899 = vcmask 687648
    %900 = vst.msk [vmem:[#allocation2] sm:$0xff] %vm899, %v897
    %901 = vst.msk [vmem:[#allocation2 + $0x8] sm:$0xff] %vm899, %v898
    %s902 = scalar_lea.vmem [#allocation3], 168
    %v903 = vld [vmem:[%s902] sm:$0xf]
    %v904 = vld [vmem:[%s902 + $0x4] sm:$0xf]
    %v907 = vunpack.c.l.b16 %v903
    %v908 = vunpack.c.l.b16 %v904
    %v909 = vpack.c.b16 %v908, %v907
    %911 = vmatpush.bf16.msra.mxu0 %v112
    %912 = vmatpush.bf16.msra.mxu0 %v111
    %913 = vmatpush.bf16.msra.mxu0 %v110
    %914 = vmatpush.bf16.msra.mxu0 %v109
    %915 = vmatpush.bf16.msra.mxu0 %v108
    %916 = vmatpush.bf16.msra.mxu0 %v107
    %917 = vmatpush.bf16.msra.mxu0 %v106
    %918 = vmatpush.bf16.msra.mxu0 %v105
    %919 = vmatmul.bf16.gmra.mxu0 %v909
    %v920 = vpop.f32.mrf.mxu0
    %v921 = vadd.f32 0.0, %v920
    %v922 = vpop.f32.mrf.mxu0
    %v923 = vadd.f32 0.0, %v922
    %924 = vdwg.mxu0
    %v925 = vld [vmem:[#allocation2] sm:$0xff]
    %v926 = vld [vmem:[#allocation2 + $0x8] sm:$0xff]
    %929 = vrot.lane.b32.xlu0 %v921, 72
    %v930 = vpop.permute.xlu0 %929
    %931 = vrot.lane.b32.xlu0 %v923, 72
    %v932 = vpop.permute.xlu0 %931
    %v935 = vadd.f32 %v925, %v930
    %v936 = vadd.f32 %v926, %v932
    %vm937 = vcmask 720448
    %938 = vst.msk [vmem:[#allocation2] sm:$0xff] %vm937, %v935
    %939 = vst.msk [vmem:[#allocation2 + $0x8] sm:$0xff] %vm937, %v936
    %s940 = scalar_lea.vmem [#allocation3], 176
    %v941 = vld [vmem:[%s940] sm:$0xf]
    %v942 = vld [vmem:[%s940 + $0x4] sm:$0xf]
    %v945 = vunpack.c.l.b16 %v941
    %v946 = vunpack.c.l.b16 %v942
    %v947 = vpack.c.b16 %v946, %v945
    %949 = vmatpush.bf16.msra.mxu0 %v112
    %950 = vmatpush.bf16.msra.mxu0 %v111
    %951 = vmatpush.bf16.msra.mxu0 %v110
    %952 = vmatpush.bf16.msra.mxu0 %v109
    %953 = vmatpush.bf16.msra.mxu0 %v108
    %954 = vmatpush.bf16.msra.mxu0 %v107
    %955 = vmatpush.bf16.msra.mxu0 %v106
    %956 = vmatpush.bf16.msra.mxu0 %v105
    %957 = vmatmul.bf16.gmra.mxu0 %v947
    %v958 = vpop.f32.mrf.mxu0
    %v959 = vadd.f32 0.0, %v958
    %v960 = vpop.f32.mrf.mxu0
    %v961 = vadd.f32 0.0, %v960
    %962 = vdwg.mxu0
    %v963 = vld [vmem:[#allocation2] sm:$0xff]
    %v964 = vld [vmem:[#allocation2 + $0x8] sm:$0xff]
    %967 = vrot.lane.b32.xlu0 %v959, 76
    %v968 = vpop.permute.xlu0 %967
    %969 = vrot.lane.b32.xlu0 %v961, 76
    %v970 = vpop.permute.xlu0 %969
    %v973 = vadd.f32 %v963, %v968
    %v974 = vadd.f32 %v964, %v970
    %vm975 = vcmask 753248
    %976 = vst.msk [vmem:[#allocation2] sm:$0xff] %vm975, %v973
    %977 = vst.msk [vmem:[#allocation2 + $0x8] sm:$0xff] %vm975, %v974
    %s978 = scalar_lea.vmem [#allocation3], 184
    %v979 = vld [vmem:[%s978] sm:$0xf]
    %v980 = vld [vmem:[%s978 + $0x4] sm:$0xf]
    %v983 = vunpack.c.l.b16 %v979
    %v984 = vunpack.c.l.b16 %v980
    %v985 = vpack.c.b16 %v984, %v983
    %987 = vmatpush.bf16.msra.mxu0 %v112
    %988 = vmatpush.bf16.msra.mxu0 %v111
    %989 = vmatpush.bf16.msra.mxu0 %v110
    %990 = vmatpush.bf16.msra.mxu0 %v109
    %991 = vmatpush.bf16.msra.mxu0 %v108
    %992 = vmatpush.bf16.msra.mxu0 %v107
    %993 = vmatpush.bf16.msra.mxu0 %v106
    %994 = vmatpush.bf16.msra.mxu0 %v105
    %995 = vmatmul.bf16.gmra.mxu0 %v985
    %v996 = vpop.f32.mrf.mxu0
    %v997 = vadd.f32 0.0, %v996
    %v998 = vpop.f32.mrf.mxu0
    %v999 = vadd.f32 0.0, %v998
    %1000 = vdwg.mxu0
    %v1001 = vld [vmem:[#allocation2] sm:$0xff]
    %v1002 = vld [vmem:[#allocation2 + $0x8] sm:$0xff]
    %1005 = vrot.lane.b32.xlu0 %v997, 80
    %v1006 = vpop.permute.xlu0 %1005
    %1007 = vrot.lane.b32.xlu0 %v999, 80
    %v1008 = vpop.permute.xlu0 %1007
    %v1011 = vadd.f32 %v1001, %v1006
    %v1012 = vadd.f32 %v1002, %v1008
    %vm1013 = vcmask 786048
    %1014 = vst.msk [vmem:[#allocation2] sm:$0xff] %vm1013, %v1011
    %1015 = vst.msk [vmem:[#allocation2 + $0x8] sm:$0xff] %vm1013, %v1012
    %s1016 = scalar_lea.vmem [#allocation3], 192
    %v1017 = vld [vmem:[%s1016] sm:$0xf]
    %v1018 = vld [vmem:[%s1016 + $0x4] sm:$0xf]
    %v1021 = vunpack.c.l.b16 %v1017
    %v1022 = vunpack.c.l.b16 %v1018
    %v1023 = vpack.c.b16 %v1022, %v1021
    %1025 = vmatpush.bf16.msra.mxu0 %v112
    %1026 = vmatpush.bf16.msra.mxu0 %v111
    %1027 = vmatpush.bf16.msra.mxu0 %v110
    %1028 = vmatpush.bf16.msra.mxu0 %v109
    %1029 = vmatpush.bf16.msra.mxu0 %v108
    %1030 = vmatpush.bf16.msra.mxu0 %v107
    %1031 = vmatpush.bf16.msra.mxu0 %v106
    %1032 = vmatpush.bf16.msra.mxu0 %v105
    %1033 = vmatmul.bf16.gmra.mxu0 %v1023
    %v1034 = vpop.f32.mrf.mxu0
    %v1035 = vadd.f32 0.0, %v1034
    %v1036 = vpop.f32.mrf.mxu0
    %v1037 = vadd.f32 0.0, %v1036
    %1038 = vdwg.mxu0
    %v1039 = vld [vmem:[#allocation2] sm:$0xff]
    %v1040 = vld [vmem:[#allocation2 + $0x8] sm:$0xff]
    %1043 = vrot.lane.b32.xlu0 %v1035, 84
    %v1044 = vpop.permute.xlu0 %1043
    %1045 = vrot.lane.b32.xlu0 %v1037, 84
    %v1046 = vpop.permute.xlu0 %1045
    %v1049 = vadd.f32 %v1039, %v1044
    %v1050 = vadd.f32 %v1040, %v1046
    %vm1051 = vcmask 818848
    %1052 = vst.msk [vmem:[#allocation2] sm:$0xff] %vm1051, %v1049
    %1053 = vst.msk [vmem:[#allocation2 + $0x8] sm:$0xff] %vm1051, %v1050
    %s1054 = scalar_lea.vmem [#allocation3], 200
    %v1055 = vld [vmem:[%s1054] sm:$0xf]
    %v1056 = vld [vmem:[%s1054 + $0x4] sm:$0xf]
    %v1059 = vunpack.c.l.b16 %v1055
    %v1060 = vunpack.c.l.b16 %v1056
    %v1061 = vpack.c.b16 %v1060, %v1059
    %1063 = vmatpush.bf16.msra.mxu0 %v112
    %1064 = vmatpush.bf16.msra.mxu0 %v111
    %1065 = vmatpush.bf16.msra.mxu0 %v110
    %1066 = vmatpush.bf16.msra.mxu0 %v109
    %1067 = vmatpush.bf16.msra.mxu0 %v108
    %1068 = vmatpush.bf16.msra.mxu0 %v107
    %1069 = vmatpush.bf16.msra.mxu0 %v106
    %1070 = vmatpush.bf16.msra.mxu0 %v105
    %1071 = vmatmul.bf16.gmra.mxu0 %v1061
    %v1072 = vpop.f32.mrf.mxu0
    %v1073 = vadd.f32 0.0, %v1072
    %v1074 = vpop.f32.mrf.mxu0
    %v1075 = vadd.f32 0.0, %v1074
    %1076 = vdwg.mxu0
    %v1077 = vld [vmem:[#allocation2] sm:$0xff]
    %v1078 = vld [vmem:[#allocation2 + $0x8] sm:$0xff]
    %1081 = vrot.lane.b32.xlu0 %v1073, 88
    %v1082 = vpop.permute.xlu0 %1081
    %1083 = vrot.lane.b32.xlu0 %v1075, 88
    %v1084 = vpop.permute.xlu0 %1083
    %v1087 = vadd.f32 %v1077, %v1082
    %v1088 = vadd.f32 %v1078, %v1084
    %vm1089 = vcmask 851648
    %1090 = vst.msk [vmem:[#allocation2] sm:$0xff] %vm1089, %v1087
    %1091 = vst.msk [vmem:[#allocation2 + $0x8] sm:$0xff] %vm1089, %v1088
    %s1092 = scalar_lea.vmem [#allocation3], 208
    %v1093 = vld [vmem:[%s1092] sm:$0xf]
    %v1094 = vld [vmem:[%s1092 + $0x4] sm:$0xf]
    %v1097 = vunpack.c.l.b16 %v1093
    %v1098 = vunpack.c.l.b16 %v1094
    %v1099 = vpack.c.b16 %v1098, %v1097
    %1101 = vmatpush.bf16.msra.mxu0 %v112
    %1102 = vmatpush.bf16.msra.mxu0 %v111
    %1103 = vmatpush.bf16.msra.mxu0 %v110
    %1104 = vmatpush.bf16.msra.mxu0 %v109
    %1105 = vmatpush.bf16.msra.mxu0 %v108
    %1106 = vmatpush.bf16.msra.mxu0 %v107
    %1107 = vmatpush.bf16.msra.mxu0 %v106
    %1108 = vmatpush.bf16.msra.mxu0 %v105
    %1109 = vmatmul.bf16.gmra.mxu0 %v1099
    %v1110 = vpop.f32.mrf.mxu0
    %v1111 = vadd.f32 0.0, %v1110
    %v1112 = vpop.f32.mrf.mxu0
    %v1113 = vadd.f32 0.0, %v1112
    %1114 = vdwg.mxu0
    %v1115 = vld [vmem:[#allocation2] sm:$0xff]
    %v1116 = vld [vmem:[#allocation2 + $0x8] sm:$0xff]
    %1119 = vrot.lane.b32.xlu0 %v1111, 92
    %v1120 = vpop.permute.xlu0 %1119
    %1121 = vrot.lane.b32.xlu0 %v1113, 92
    %v1122 = vpop.permute.xlu0 %1121
    %v1125 = vadd.f32 %v1115, %v1120
    %v1126 = vadd.f32 %v1116, %v1122
    %vm1127 = vcmask 884448
    %1128 = vst.msk [vmem:[#allocation2] sm:$0xff] %vm1127, %v1125
    %1129 = vst.msk [vmem:[#allocation2 + $0x8] sm:$0xff] %vm1127, %v1126
    %s1130 = scalar_lea.vmem [#allocation3], 216
    %v1131 = vld [vmem:[%s1130] sm:$0xf]
    %v1132 = vld [vmem:[%s1130 + $0x4] sm:$0xf]
    %v1135 = vunpack.c.l.b16 %v1131
    %v1136 = vunpack.c.l.b16 %v1132
    %v1137 = vpack.c.b16 %v1136, %v1135
    %1139 = vmatpush.bf16.msra.mxu0 %v112
    %1140 = vmatpush.bf16.msra.mxu0 %v111
    %1141 = vmatpush.bf16.msra.mxu0 %v110
    %1142 = vmatpush.bf16.msra.mxu0 %v109
    %1143 = vmatpush.bf16.msra.mxu0 %v108
    %1144 = vmatpush.bf16.msra.mxu0 %v107
    %1145 = vmatpush.bf16.msra.mxu0 %v106
    %1146 = vmatpush.bf16.msra.mxu0 %v105
    %1147 = vmatmul.bf16.gmra.mxu0 %v1137
    %v1148 = vpop.f32.mrf.mxu0
    %v1149 = vadd.f32 0.0, %v1148
    %v1150 = vpop.f32.mrf.mxu0
    %v1151 = vadd.f32 0.0, %v1150
    %1152 = vdwg.mxu0
    %v1153 = vld [vmem:[#allocation2] sm:$0xff]
    %v1154 = vld [vmem:[#allocation2 + $0x8] sm:$0xff]
    %1157 = vrot.lane.b32.xlu0 %v1149, 96
    %v1158 = vpop.permute.xlu0 %1157
    %1159 = vrot.lane.b32.xlu0 %v1151, 96
    %v1160 = vpop.permute.xlu0 %1159
    %v1163 = vadd.f32 %v1153, %v1158
    %v1164 = vadd.f32 %v1154, %v1160
    %vm1165 = vcmask 917248
    %1166 = vst.msk [vmem:[#allocation2] sm:$0xff] %vm1165, %v1163
    %1167 = vst.msk [vmem:[#allocation2 + $0x8] sm:$0xff] %vm1165, %v1164
    %s1168 = scalar_lea.vmem [#allocation3], 224
    %v1169 = vld [vmem:[%s1168] sm:$0xf]
    %v1170 = vld [vmem:[%s1168 + $0x4] sm:$0xf]
    %v1173 = vunpack.c.l.b16 %v1169
    %v1174 = vunpack.c.l.b16 %v1170
    %v1175 = vpack.c.b16 %v1174, %v1173
    %1177 = vmatpush.bf16.msra.mxu0 %v112
    %1178 = vmatpush.bf16.msra.mxu0 %v111
    %1179 = vmatpush.bf16.msra.mxu0 %v110
    %1180 = vmatpush.bf16.msra.mxu0 %v109
    %1181 = vmatpush.bf16.msra.mxu0 %v108
    %1182 = vmatpush.bf16.msra.mxu0 %v107
    %1183 = vmatpush.bf16.msra.mxu0 %v106
    %1184 = vmatpush.bf16.msra.mxu0 %v105
    %1185 = vmatmul.bf16.gmra.mxu0 %v1175
    %v1186 = vpop.f32.mrf.mxu0
    %v1187 = vadd.f32 0.0, %v1186
    %v1188 = vpop.f32.mrf.mxu0
    %v1189 = vadd.f32 0.0, %v1188
    %1190 = vdwg.mxu0
    %v1191 = vld [vmem:[#allocation2] sm:$0xff]
    %v1192 = vld [vmem:[#allocation2 + $0x8] sm:$0xff]
    %1195 = vrot.lane.b32.xlu0 %v1187, 100
    %v1196 = vpop.permute.xlu0 %1195
    %1197 = vrot.lane.b32.xlu0 %v1189, 100
    %v1198 = vpop.permute.xlu0 %1197
    %v1201 = vadd.f32 %v1191, %v1196
    %v1202 = vadd.f32 %v1192, %v1198
    %vm1203 = vcmask 950048
    %1204 = vst.msk [vmem:[#allocation2] sm:$0xff] %vm1203, %v1201
    %1205 = vst.msk [vmem:[#allocation2 + $0x8] sm:$0xff] %vm1203, %v1202
    %s1206 = scalar_lea.vmem [#allocation3], 232
    %v1207 = vld [vmem:[%s1206] sm:$0xf]
    %v1208 = vld [vmem:[%s1206 + $0x4] sm:$0xf]
    %v1211 = vunpack.c.l.b16 %v1207
    %v1212 = vunpack.c.l.b16 %v1208
    %v1213 = vpack.c.b16 %v1212, %v1211
    %1215 = vmatpush.bf16.msra.mxu0 %v112
    %1216 = vmatpush.bf16.msra.mxu0 %v111
    %1217 = vmatpush.bf16.msra.mxu0 %v110
    %1218 = vmatpush.bf16.msra.mxu0 %v109
    %1219 = vmatpush.bf16.msra.mxu0 %v108
    %1220 = vmatpush.bf16.msra.mxu0 %v107
    %1221 = vmatpush.bf16.msra.mxu0 %v106
    %1222 = vmatpush.bf16.msra.mxu0 %v105
    %1223 = vmatmul.bf16.gmra.mxu0 %v1213
    %v1224 = vpop.f32.mrf.mxu0
    %v1225 = vadd.f32 0.0, %v1224
    %v1226 = vpop.f32.mrf.mxu0
    %v1227 = vadd.f32 0.0, %v1226
    %1228 = vdwg.mxu0
    %v1229 = vld [vmem:[#allocation2] sm:$0xff]
    %v1230 = vld [vmem:[#allocation2 + $0x8] sm:$0xff]
    %1233 = vrot.lane.b32.xlu0 %v1225, 104
    %v1234 = vpop.permute.xlu0 %1233
    %1235 = vrot.lane.b32.xlu0 %v1227, 104
    %v1236 = vpop.permute.xlu0 %1235
    %v1239 = vadd.f32 %v1229, %v1234
    %v1240 = vadd.f32 %v1230, %v1236
    %vm1241 = vcmask 982848
    %1242 = vst.msk [vmem:[#allocation2] sm:$0xff] %vm1241, %v1239
    %1243 = vst.msk [vmem:[#allocation2 + $0x8] sm:$0xff] %vm1241, %v1240
    %s1244 = scalar_lea.vmem [#allocation3], 240
    %v1245 = vld [vmem:[%s1244] sm:$0xf]
    %v1246 = vld [vmem:[%s1244 + $0x4] sm:$0xf]
    %v1249 = vunpack.c.l.b16 %v1245
    %v1250 = vunpack.c.l.b16 %v1246
    %v1251 = vpack.c.b16 %v1250, %v1249
    %1253 = vmatpush.bf16.msra.mxu0 %v112
    %1254 = vmatpush.bf16.msra.mxu0 %v111
    %1255 = vmatpush.bf16.msra.mxu0 %v110
    %1256 = vmatpush.bf16.msra.mxu0 %v109
    %1257 = vmatpush.bf16.msra.mxu0 %v108
    %1258 = vmatpush.bf16.msra.mxu0 %v107
    %1259 = vmatpush.bf16.msra.mxu0 %v106
    %1260 = vmatpush.bf16.msra.mxu0 %v105
    %1261 = vmatmul.bf16.gmra.mxu0 %v1251
    %v1262 = vpop.f32.mrf.mxu0
    %v1263 = vadd.f32 0.0, %v1262
    %v1264 = vpop.f32.mrf.mxu0
    %v1265 = vadd.f32 0.0, %v1264
    %1266 = vdwg.mxu0
    %v1267 = vld [vmem:[#allocation2] sm:$0xff]
    %v1268 = vld [vmem:[#allocation2 + $0x8] sm:$0xff]
    %1271 = vrot.lane.b32.xlu0 %v1263, 108
    %v1272 = vpop.permute.xlu0 %1271
    %1273 = vrot.lane.b32.xlu0 %v1265, 108
    %v1274 = vpop.permute.xlu0 %1273
    %v1277 = vadd.f32 %v1267, %v1272
    %v1278 = vadd.f32 %v1268, %v1274
    %vm1279 = vcmask 1015648
    %1280 = vst.msk [vmem:[#allocation2] sm:$0xff] %vm1279, %v1277
    %1281 = vst.msk [vmem:[#allocation2 + $0x8] sm:$0xff] %vm1279, %v1278
    %s1282 = scalar_lea.vmem [#allocation3], 248
    %v1283 = vld [vmem:[%s1282] sm:$0xf]
    %v1284 = vld [vmem:[%s1282 + $0x4] sm:$0xf]
    %v1287 = vunpack.c.l.b16 %v1283
    %v1288 = vunpack.c.l.b16 %v1284
    %v1289 = vpack.c.b16 %v1288, %v1287
    %1291 = vmatpush.bf16.msra.mxu0 %v112
    %1292 = vmatpush.bf16.msra.mxu0 %v111
    %1293 = vmatpush.bf16.msra.mxu0 %v110
    %1294 = vmatpush.bf16.msra.mxu0 %v109
    %1295 = vmatpush.bf16.msra.mxu0 %v108
    %1296 = vmatpush.bf16.msra.mxu0 %v107
    %1297 = vmatpush.bf16.msra.mxu0 %v106
    %1298 = vmatpush.bf16.msra.mxu0 %v105
    %1299 = vmatmul.bf16.gmra.mxu0 %v1289
    %v1300 = vpop.f32.mrf.mxu0
    %v1301 = vadd.f32 0.0, %v1300
    %v1302 = vpop.f32.mrf.mxu0
    %v1303 = vadd.f32 0.0, %v1302
    %1304 = vdwg.mxu0
    %v1305 = vld [vmem:[#allocation2] sm:$0xff]
    %v1306 = vld [vmem:[#allocation2 + $0x8] sm:$0xff]
    %1309 = vrot.lane.b32.xlu0 %v1301, 112
    %v1310 = vpop.permute.xlu0 %1309
    %1311 = vrot.lane.b32.xlu0 %v1303, 112
    %v1312 = vpop.permute.xlu0 %1311
    %v1315 = vadd.f32 %v1305, %v1310
    %v1316 = vadd.f32 %v1306, %v1312
    %vm1317 = vcmask 1048448
    %1318 = vst.msk [vmem:[#allocation2] sm:$0xff] %vm1317, %v1315
    %1319 = vst.msk [vmem:[#allocation2 + $0x8] sm:$0xff] %vm1317, %v1316
    %s1320 = scalar_lea.vmem [#allocation3], 256
    %v1321 = vld [vmem:[%s1320] sm:$0xf]
    %v1322 = vld [vmem:[%s1320 + $0x4] sm:$0xf]
    %v1325 = vunpack.c.l.b16 %v1321
    %v1326 = vunpack.c.l.b16 %v1322
    %v1327 = vpack.c.b16 %v1326, %v1325
    %1329 = vmatpush.bf16.msra.mxu0 %v112
    %1330 = vmatpush.bf16.msra.mxu0 %v111
    %1331 = vmatpush.bf16.msra.mxu0 %v110
    %1332 = vmatpush.bf16.msra.mxu0 %v109
    %1333 = vmatpush.bf16.msra.mxu0 %v108
    %1334 = vmatpush.bf16.msra.mxu0 %v107
    %1335 = vmatpush.bf16.msra.mxu0 %v106
    %1336 = vmatpush.bf16.msra.mxu0 %v105
    %1337 = vmatmul.bf16.gmra.mxu0 %v1327
    %v1338 = vpop.f32.mrf.mxu0
    %v1339 = vadd.f32 0.0, %v1338
    %v1340 = vpop.f32.mrf.mxu0
    %v1341 = vadd.f32 0.0, %v1340
    %1342 = vdwg.mxu0
    %v1343 = vld [vmem:[#allocation2] sm:$0xff]
    %v1344 = vld [vmem:[#allocation2 + $0x8] sm:$0xff]
    %1347 = vrot.lane.b32.xlu0 %v1339, 116
    %v1348 = vpop.permute.xlu0 %1347
    %1349 = vrot.lane.b32.xlu0 %v1341, 116
    %v1350 = vpop.permute.xlu0 %1349
    %v1353 = vadd.f32 %v1343, %v1348
    %v1354 = vadd.f32 %v1344, %v1350
    %vm1355 = vcmask 1048480
    %1356 = vst.msk [vmem:[#allocation2] sm:$0xff] %vm1355, %v1353
    %1357 = vst.msk [vmem:[#allocation2 + $0x8] sm:$0xff] %vm1355, %v1354
    %s1358 = scalar_lea.vmem [#allocation3], 264
    %v1359 = vld [vmem:[%s1358] sm:$0xf]
    %v1360 = vld [vmem:[%s1358 + $0x4] sm:$0xf]
    %v1363 = vunpack.c.l.b16 %v1359
    %v1364 = vunpack.c.l.b16 %v1360
    %v1365 = vpack.c.b16 %v1364, %v1363
    %1367 = vmatpush.bf16.msra.mxu0 %v112
    %1368 = vmatpush.bf16.msra.mxu0 %v111
    %1369 = vmatpush.bf16.msra.mxu0 %v110
    %1370 = vmatpush.bf16.msra.mxu0 %v109
    %1371 = vmatpush.bf16.msra.mxu0 %v108
    %1372 = vmatpush.bf16.msra.mxu0 %v107
    %1373 = vmatpush.bf16.msra.mxu0 %v106
    %1374 = vmatpush.bf16.msra.mxu0 %v105
    %1375 = vmatmul.bf16.gmra.mxu0 %v1365
    %v1376 = vpop.f32.mrf.mxu0
    %v1377 = vadd.f32 0.0, %v1376
    %v1378 = vpop.f32.mrf.mxu0
    %v1379 = vadd.f32 0.0, %v1378
    %1380 = vdwg.mxu0
    %v1381 = vld [vmem:[#allocation2] sm:$0xff]
    %v1382 = vld [vmem:[#allocation2 + $0x8] sm:$0xff]
    %1385 = vrot.lane.b32.xlu0 %v1377, 120
    %v1386 = vpop.permute.xlu0 %1385
    %1387 = vrot.lane.b32.xlu0 %v1379, 120
    %v1388 = vpop.permute.xlu0 %1387
    %v1391 = vadd.f32 %v1381, %v1386
    %v1392 = vadd.f32 %v1382, %v1388
    %vm1393 = vcmask 1048512
    %1394 = vst.msk [vmem:[#allocation2] sm:$0xff] %vm1393, %v1391
    %1395 = vst.msk [vmem:[#allocation2 + $0x8] sm:$0xff] %vm1393, %v1392
    %s1396 = scalar_lea.vmem [#allocation3], 272
    %v1397 = vld [vmem:[%s1396] sm:$0xf]
    %v1398 = vld [vmem:[%s1396 + $0x4] sm:$0xf]
    %v1401 = vunpack.c.l.b16 %v1397
    %v1402 = vunpack.c.l.b16 %v1398
    %v1403 = vpack.c.b16 %v1402, %v1401
    %1405 = vmatpush.bf16.msra.mxu0 %v112
    %1406 = vmatpush.bf16.msra.mxu0 %v111
    %1407 = vmatpush.bf16.msra.mxu0 %v110
    %1408 = vmatpush.bf16.msra.mxu0 %v109
    %1409 = vmatpush.bf16.msra.mxu0 %v108
    %1410 = vmatpush.bf16.msra.mxu0 %v107
    %1411 = vmatpush.bf16.msra.mxu0 %v106
    %1412 = vmatpush.bf16.msra.mxu0 %v105
    %1413 = vmatmul.bf16.gmra.mxu0 %v1403
    %v1414 = vpop.f32.mrf.mxu0
    %v1415 = vadd.f32 0.0, %v1414
    %v1416 = vpop.f32.mrf.mxu0
    %v1417 = vadd.f32 0.0, %v1416
    %1418 = vdwg.mxu0
    %v1419 = vld [vmem:[#allocation2] sm:$0xff]
    %v1420 = vld [vmem:[#allocation2 + $0x8] sm:$0xff]
    %1423 = vrot.lane.b32.xlu0 %v1415, 124
    %v1424 = vpop.permute.xlu0 %1423
    %1425 = vrot.lane.b32.xlu0 %v1417, 124
    %v1426 = vpop.permute.xlu0 %1425
    %v1429 = vadd.f32 %v1419, %v1424
    %v1430 = vadd.f32 %v1420, %v1426
    %vm1431 = vcmask 1048544
    %1432 = vst.msk [vmem:[#allocation2] sm:$0xff] %vm1431, %v1429
    %1433 = vst.msk [vmem:[#allocation2 + $0x8] sm:$0xff] %vm1431, %v1430
    %v1434 = vld [vmem:[#allocation2] sm:$0xff]
    %v1435 = vld [vmem:[#allocation2 + $0x8] sm:$0xff]
    %v1436 = vld [vmem:[%s2] sm:$0x1]
    %v1438 = vperm.slane %v1436, 0
    %v1440 = vmul.f32 %v1434, %v1438
    %v1441 = vmul.f32 %v1435, %v1438
    %v1442 = vand.u32 2147483647, %v1440
    %v1443 = vand.u32 2147483647, %v1441
    %v1444 = vadd.f32 %v1442, %v1443
    %1445 = vadd.xlane.f32.xlu0 %v1444
    %v1446 = vpop.xlane.xlu0 %1445
    %v1447 = vrot.slane %v1446, 4
    %v1448 = vadd.f32 %v1446, %v1447
    %v1449 = vrot.slane %v1448, 2
    %v1450 = vadd.f32 %v1448, %v1449
    %v1451 = vrot.slane %v1450, 1
    %v1452 = vadd.f32 %v1450, %v1451
    %s1453 = vtos %v1452
    %v1454 = vstv %s1453
    %1455 = vst [vmem:[#allocation8] sm:$0xff] %v1454
    // Predicated region
    $region22: #{tpu_custom_call.1} parent=1 // pred_check
      _
    $region23: #{tpu_custom_call.1} parent=1 // pred_check_branch
      %1457 = sbr.rel (0) target = $region25
    $region24: #{tpu_custom_call.1} parent=1 // pred_region
      %1459 = vsyncadd [#allocation5], 0
      %s1461 = sshll.u32 [#allocation8], 4
      %s1462 = int_to_ptr.vmem [resolvable:$true] %s1461
      %s1463 = sshll.u32 %s3, 4
      %s1464 = int_to_ptr.hbm [resolvable:$true] %s1463
      %1466 = dma.vmem_to_hbm [thread:$0]  %s1462, 128, %s1464, [#allocation5]
    $region25: #{tpu_custom_call.1} parent=1 // pred_fallthru
      _
    // Predicated region
    $region26: #{tpu_custom_call.1} parent=1 // pred_check
      _
    $region27: #{tpu_custom_call.1} parent=1 // pred_check_branch
      %1468 = sbr.rel (0) target = $region29
    $region28: #{tpu_custom_call.1} parent=1 // pred_region
      %1470 = dma.done [#allocation5], 128
    $region29: #{tpu_custom_call.1} parent=1 // pred_fallthru
      _
    %1471 = vsyncpa [#allocation4], 1
    %1472 = vsyncpa [#allocation7], 1
    %1473 = vsyncpa [#allocation5], 1

</llo_original>
